<compile_context>
chip_gen: v7x
topology: tpu7x:2x2x1
jax: 0.10.0
libtpu: 0.0.40
codegen_flags: <defaults>
</compile_context>

<pallas_src>
import functools

import jax
import jax.numpy as jnp
from jax.experimental import pallas as pl
from jax.experimental.pallas import tpu as pltpu


def _round_up(x, m):
    return (x + m - 1) // m * m


def _vmem_plan():
    """Returns (vmem_limit_bytes or None, per-step tile budget in bytes)."""
    try:
        cap = int(pltpu.get_tpu_info().vmem_capacity_bytes)
    except Exception:
        # Unknown chip / interpret mode: stay inside the default scoped limits.
        return None, 12 << 20
    if cap >= (128 << 20):                     # v5e / v6e / v5p: 128 MiB physical
        return 96 << 20, 72 << 20
    # Smaller-VMEM parts (v7x: 64 MiB per TC): keep headroom under physical.
    limit = min(48 << 20, cap * 3 // 4)
    budget = max(8 << 20, limit - (8 << 20))
    return limit, budget


def _attention_kernel(out_ref, enc_ref, w_ref, b_ref, y_ref, attn_ref, *,
                      t_in_valid, compute_dtype, approx_recip):
    # out_ref : (Bt, Tq,    Hp)  queries ("output" in the torch module)
    # enc_ref : (Bt, Tin_p, Hp)  encoder outputs (keys == values)
    # w_ref   : (2, Hp, Hp)      [0] = W[:, :H]^T (mix half), [1] = W[:, H:]^T (query half)
    # b_ref   : (1, Hp)          bias row (f32)
    q = out_ref[...].astype(compute_dtype)
    e = enc_ref[...].astype(compute_dtype)

    # scores = output @ encoder_outs^T, expressed as a contraction over H so the
    # MXU is fed from the lane-major layout.
    # TODO(synk): if the bundle dump shows a per-step XLU vxpose of the encoder
    # block here, pre-transpose it once per batch tile into VMEM scratch.
    scores = jnp.einsum("bqh,bkh->bqk", q, e, preferred_element_type=jnp.float32)

    # Mask padded key positions (T_in zero-padded up to a multiple of 128).
    t_in_p = scores.shape[-1]
    if t_in_valid < t_in_p:
        key_idx = jax.lax.broadcasted_iota(jnp.int32, scores.shape, 2)
        scores = jnp.where(key_idx < t_in_valid, scores, -1e30)

    # Row softmax over T_in.
    m = jnp.max(scores, axis=-1, keepdims=True)
    p = jnp.exp(scores - m)
    l = jnp.sum(p, axis=-1, keepdims=True)
    attn = p * pl.reciprocal(l, approx=approx_recip)
    attn_ref[...] = attn.astype(attn_ref.dtype)

    # mix = attn @ encoder_outs
    mix = jnp.einsum("bqk,bkh->bqh", attn.astype(compute_dtype), e,
                     preferred_element_type=jnp.float32)

    # Output projection: two K=Hp matmuls accumulated in f32 (no concat buffer),
    # with batch folded into M (weight is batch-invariant) for MXU occupancy.
    bt, tq, hp = mix.shape
    mix2 = mix.astype(compute_dtype).reshape(bt * tq, hp)
    q2 = q.reshape(bt * tq, hp)
    lin = jnp.dot(mix2, w_ref[0].astype(compute_dtype),
                  preferred_element_type=jnp.float32)
    lin = lin + jnp.dot(q2, w_ref[1].astype(compute_dtype),
                        preferred_element_type=jnp.float32)
    lin = lin + b_ref[...].astype(jnp.float32)
    y_ref[...] = jnp.tanh(lin).reshape(bt, tq, hp).astype(y_ref.dtype)


def attention_forward(output, encoder_outs, weight, bias, *,
                      compute_dtype=jnp.bfloat16, approx_recip=False):
    """output: (B, T_out, H); encoder_outs: (B, T_in, H);
    weight: (H, 2H) (PyTorch nn.Linear layout, [W_mix | W_query]); bias: (H,).

    Returns (y, attn) matching the torch module's forward. y keeps output.dtype.
    On the bf16 fast path (compute_dtype=bfloat16) the inputs are streamed to the
    kernel in bf16 and attn is returned in bf16 (explicit choice: the attn store
    dominates HBM traffic when T_in >> H)."""
    B, T_out, H = output.shape
    _, T_in, _ = encoder_outs.shape
    in_dtype = jnp.dtype(output.dtype)
    compute_dtype = jnp.dtype(compute_dtype)
    fast_io = compute_dtype == jnp.dtype(jnp.bfloat16)
    io_dtype = jnp.dtype(jnp.bfloat16) if fast_io else in_dtype
    attn_dtype = io_dtype
    y_dtype = in_dtype

    # ---- padded shapes (lane-dense stores, (8,128)/bf16-pack tiling) ----
    Hp = _round_up(H, 128)
    Tin_p = _round_up(T_in, 128)
    Tout_base = _round_up(T_out, 16)

    # ---- generation-aware VMEM plan ----
    vmem_limit, budget = _vmem_plan()

    in_isz = io_dtype.itemsize
    y_isz = y_dtype.itemsize
    attn_isz = attn_dtype.itemsize
    cd_isz = compute_dtype.itemsize

    def _step_bytes(bt, tq):
        # Everything that lives in VMEM for one grid step.
        blocks = (2 * bt * tq * Hp * in_isz            # queries (double-buffered)
                  + 2 * bt * Tin_p * Hp * in_isz       # encoder (double-buffered)
                  + 2 * 2 * Hp * Hp * in_isz           # weight halves (x2 for safety)
                  + 2 * Hp * 4                         # bias
                  + 2 * bt * tq * Hp * y_isz           # y out (double-buffered)
                  + 2 * bt * tq * Tin_p * attn_isz)    # attn out (double-buffered)
        interm = (3 * bt * tq * Tin_p * 4              # scores / exp / attn in f32
                  + 2 * bt * tq * Hp * 4               # mix + lin in f32
                  + bt * (tq + Tin_p) * Hp * cd_isz)   # compute-dtype casts of q / e
        return blocks + interm

    # ---- tile selection: keep Tq (MXU M dim) wide; shrink Bt first ----
    Bt = min(B, 8)
    if Tout_base < 128:
        Tq, tq_floor = Tout_base, Tout_base
    else:
        Tq = 512 if Tout_base >= 512 else _round_up(Tout_base, 128)
        tq_floor = 128
    while Bt > 1 and _step_bytes(Bt, Tq) > budget:
        Bt = max(1, Bt // 2)
    while Tq > tq_floor and _step_bytes(Bt, Tq) > budget:
        Tq = max(tq_floor, Tq // 2)
    # TODO(synk): for very long T_in on v7x, add a third "arbitrary" T_in grid axis
    # with flash-style online-softmax accumulators instead of keeping Tin_p resident.

    Bp = _round_up(B, Bt)
    Tout_p = _round_up(Tout_base, Tq)

    # ---- pad / cast operands (zero padding keeps padded rows/cols inert) ----
    out_p = jnp.zeros((Bp, Tout_p, Hp), io_dtype).at[:B, :T_out, :H].set(
        output.astype(io_dtype))
    enc_p = jnp.zeros((Bp, Tin_p, Hp), io_dtype).at[:B, :T_in, :H].set(
        encoder_outs.astype(io_dtype))
    # Two pre-transposed (Hp, Hp) halves so the projection is
    #   y = mix @ W[:, :H]^T + output @ W[:, H:]^T + b   (no in-kernel concat).
    w_p = jnp.zeros((2, Hp, Hp), io_dtype)
    w_p = w_p.at[0, :H, :H].set(jnp.transpose(weight[:, :H]).astype(io_dtype))
    w_p = w_p.at[1, :H, :H].set(jnp.transpose(weight[:, H:]).astype(io_dtype))
    b_p = jnp.zeros((1, Hp), jnp.float32).at[0, :H].set(bias.astype(jnp.float32))

    grid = (Bp // Bt, Tout_p // Tq)
    n_tq = grid[1]

    flops = B * (2 * T_out * T_in * H            # scores
                 + 2 * T_out * T_in * H          # mix
                 + 2 * T_out * (2 * H) * H)      # output projection
    transcendentals = B * T_out * (T_in + H)     # exp + tanh
    bytes_accessed = (Bp * Tout_p * Hp * in_isz
                      + n_tq * Bp * Tin_p * Hp * in_isz   # encoder re-read per Tq tile
                      + 2 * Hp * Hp * in_isz + Hp * 4
                      + Bp * Tout_p * Hp * y_isz
                      + Bp * Tout_p * Tin_p * attn_isz)

    kernel = functools.partial(
        _attention_kernel, t_in_valid=T_in,
        compute_dtype=compute_dtype, approx_recip=approx_recip)

    def _build_call(single_buffer_consts):
        const_kwargs = (dict(pipeline_mode=pl.Buffered(1))
                        if single_buffer_consts else {})
        in_specs = [
            pl.BlockSpec((Bt, Tq, Hp), lambda b, t: (b, t, 0)),      # queries
            pl.BlockSpec((Bt, Tin_p, Hp), lambda b, t: (b, 0, 0)),   # encoder
            pl.BlockSpec((2, Hp, Hp), lambda b, t: (0, 0, 0), **const_kwargs),
            pl.BlockSpec((1, Hp), lambda b, t: (0, 0), **const_kwargs),
        ]
        out_specs = [
            pl.BlockSpec((Bt, Tq, Hp), lambda b, t: (b, t, 0)),      # y
            pl.BlockSpec((Bt, Tq, Tin_p), lambda b, t: (b, t, 0)),   # attn
        ]
        return pl.pallas_call(
            kernel,
            out_shape=(
                jax.ShapeDtypeStruct((Bp, Tout_p, Hp), y_dtype),
                jax.ShapeDtypeStruct((Bp, Tout_p, Tin_p), attn_dtype),
            ),
            grid_spec=pltpu.PrefetchScalarGridSpec(
                num_scalar_prefetch=0,
                grid=grid,
                in_specs=in_specs,
                out_specs=out_specs,
            ),
            compiler_params=pltpu.CompilerParams(
                dimension_semantics=("parallel", "parallel"),
                vmem_limit_bytes=vmem_limit),
            cost_estimate=pl.CostEstimate(
                flops=flops, transcendentals=transcendentals,
                bytes_accessed=bytes_accessed),
        )

    try:
        y_p, attn_p = _build_call(True)(out_p, enc_p, w_p, b_p)
    except Exception:
        # Compatibility fallback: jax versions without BlockSpec pipeline_mode /
        # Buffered(1) constant operands -> default double-buffered constants.
        y_p, attn_p = _build_call(False)(out_p, enc_p, w_p, b_p)

    # Slice away the padding.
    return y_p[:B, :T_out, :H], attn_p[:B, :T_out, :T_in]


def _reference(output, encoder_outs, weight, bias):
    # Pure-JAX reference mirroring the PyTorch forward.
    scores = jnp.einsum("bqh,bkh->bqk", output, encoder_outs)
    attn = jax.nn.softmax(scores, axis=-1)
    mix = jnp.einsum("bqk,bkh->bqh", attn, encoder_outs)
    combined = jnp.concatenate([mix, output], axis=-1)
    y = jnp.tanh(jnp.einsum("bqd,hd->bqh", combined, weight) + bias)
    return y, attn


if __name__ == "__main__":
    def make_inputs(key, B, T_out, T_in, H):
        k1, k2, k3, k4 = jax.random.split(key, 4)
        output = jax.random.normal(k1, (B, T_out, H), dtype=jnp.float32)
        encoder_outs = jax.random.normal(k2, (B, T_in, H), dtype=jnp.float32)
        bound = 1.0 / jnp.sqrt(2.0 * H)
        weight = jax.random.uniform(k3, (H, 2 * H), minval=-bound, maxval=bound,
                                    dtype=jnp.float32)
        bias = jax.random.uniform(k4, (H,), minval=-bound, maxval=bound,
                                  dtype=jnp.float32)
        return output, encoder_outs, weight, bias

    k0, k1, k2 = jax.random.split(jax.random.PRNGKey(0), 3)

    # 1) exact path (f32 compute, exact reciprocal) at the module's small shapes.
    B, T_out, T_in, H = 2, 8, 8, 32
    output, encoder_outs, weight, bias = make_inputs(k0, B, T_out, T_in, H)
    y, attn = attention_forward(output, encoder_outs, weight, bias,
                                compute_dtype=jnp.float32, approx_recip=False)
    y, attn = jax.block_until_ready((y, attn))
    y_ref, attn_ref = _reference(output, encoder_outs, weight, bias)
    assert y.shape == (B, T_out, H) and attn.shape == (B, T_out, T_in)
    assert jnp.allclose(y, y_ref, atol=1e-5, rtol=1e-5)
    assert jnp.allclose(attn, attn_ref, atol=1e-5, rtol=1e-5)

    # 2) exact path on shapes exercising batch tiling, T_out tiling and key
    #    masking (grid has both axes > 1).
    B2, T_out2, T_in2, H2 = 10, 560, 40, 48
    out2, enc2, w2, b2 = make_inputs(k1, B2, T_out2, T_in2, H2)
    y2, attn2 = attention_forward(out2, enc2, w2, b2,
                                  compute_dtype=jnp.float32, approx_recip=False)
    y2, attn2 = jax.block_until_ready((y2, attn2))
    y2_ref, attn2_ref = _reference(out2, enc2, w2, b2)
    assert y2.shape == (B2, T_out2, H2) and attn2.shape == (B2, T_out2, T_in2)
    assert jnp.allclose(y2, y2_ref, atol=1e-3, rtol=1e-3)
    assert jnp.allclose(attn2, attn2_ref, atol=1e-3, rtol=1e-3)

    # 3) fast path (bf16 HBM I/O + f32 accumulation, EUP approx reciprocal).
    B3, T_out3, T_in3, H3 = 3, 20, 48, 40
    out3, enc3, w3, b3 = make_inputs(k2, B3, T_out3, T_in3, H3)
    y3, attn3 = attention_forward(out3, enc3, w3, b3,
                                  compute_dtype=jnp.bfloat16, approx_recip=True)
    y3, attn3 = jax.block_until_ready((y3, attn3))
    y3_ref, attn3_ref = _reference(out3, enc3, w3, b3)
    assert y3.shape == (B3, T_out3, H3) and attn3.shape == (B3, T_out3, T_in3)
    assert y3.dtype == jnp.float32 and attn3.dtype == jnp.bfloat16
    assert jnp.allclose(y3, y3_ref, atol=0.15, rtol=0.1)
    assert jnp.allclose(attn3.astype(jnp.float32), attn3_ref, atol=0.15, rtol=0.1)

    print("KERNEL_OK")
</pallas_src>

<mosaic_0001>
module attributes {stable_mosaic.version = 11 : i64} {
  func.func @_attention_kernel(%arg0: i32, %arg1: i32, %arg2: memref<2x16x128xf32, #tpu.memory_space<vmem>>, %arg3: memref<2x128x128xf32, #tpu.memory_space<vmem>>, %arg4: memref<2x128x128xf32, #tpu.memory_space<vmem>>, %arg5: memref<1x128xf32, #tpu.memory_space<vmem>>, %arg6: memref<2x16x128xf32, #tpu.memory_space<vmem>>, %arg7: memref<2x16x128xf32, #tpu.memory_space<vmem>>) attributes {dimension_semantics = [#tpu.dimension_semantics<parallel>, #tpu.dimension_semantics<parallel>], iteration_bounds = array<i64: 1, 1>, scalar_prefetch = 0 : i64, scratch_operands = 0 : i64, tpu.core_type = #tpu.core_type<tc>, window_params = [{transform_indices = @transform_0, window_bounds = array<i64: 2, 16, 128>}, {transform_indices = @transform_1, window_bounds = array<i64: 2, 128, 128>}, {pipeline_mode = #tpu.pipeline_mode<synchronous>, transform_indices = @transform_2, window_bounds = array<i64: 2, 128, 128>}, {pipeline_mode = #tpu.pipeline_mode<synchronous>, transform_indices = @transform_3, window_bounds = array<i64: 1, 128>}, {transform_indices = @transform_4, window_bounds = array<i64: 2, 16, 128>}, {transform_indices = @transform_5, window_bounds = array<i64: 2, 16, 128>}]} {
    %c0 = arith.constant 0 : index
    %c0_0 = arith.constant 0 : index
    %c0_1 = arith.constant 0 : index
    %0 = vector.load %arg2[%c0, %c0_0, %c0_1] : memref<2x16x128xf32, #tpu.memory_space<vmem>>, vector<2x16x128xf32>
    %c0_2 = arith.constant 0 : index
    %c0_3 = arith.constant 0 : index
    %c0_4 = arith.constant 0 : index
    %1 = vector.load %arg3[%c0_2, %c0_3, %c0_4] : memref<2x128x128xf32, #tpu.memory_space<vmem>>, vector<2x128x128xf32>
    "tpu.trace_start"() <{level = 10 : i32, message = "bqh,bkh->bqk"}> : () -> ()
    %cst = arith.constant dense<0.000000e+00> : vector<2x16x128xf32>
    %2 = tpu.matmul %0, %1, %cst {dimension_numbers = #tpu.dot_dimension_numbers<[2], [2], [1], [1], [0, 0, 0, 1, 1, 1], [0], [0]>} : vector<2x16x128xf32>, vector<2x128x128xf32>, vector<2x16x128xf32> -> vector<2x16x128xf32>
    "tpu.trace_stop"() : () -> ()
    %3 = tpu.iota {dimensions = array<i32: 2>} : vector<2x16x128xi32>
    %c8_i32 = arith.constant 8 : i32
    %4 = vector.broadcast %c8_i32 : i32 to vector<2x16x128xi32>
    %5 = arith.cmpi slt, %3, %4 : vector<2x16x128xi32>
    %cst_5 = arith.constant -1.000000e+30 : f32
    %6 = vector.broadcast %cst_5 : f32 to vector<2x16x128xf32>
    %7 = arith.select %5, %2, %6 : vector<2x16x128xi1>, vector<2x16x128xf32>
    %cst_6 = arith.constant dense<0xFF800000> : vector<2x16xf32>
    %8 = vector.multi_reduction <maximumf>, %7, %cst_6 [2] : vector<2x16x128xf32> to vector<2x16xf32>
    %9 = vector.shape_cast %8 : vector<2x16xf32> to vector<2x16x1xf32>
    %10 = vector.broadcast %9 : vector<2x16x1xf32> to vector<2x16x128xf32>
    %11 = arith.subf %7, %10 : vector<2x16x128xf32>
    %12 = math.exp %11 : vector<2x16x128xf32>
    %cst_7 = arith.constant dense<0.000000e+00> : vector<2x16xf32>
    %13 = vector.multi_reduction <add>, %12, %cst_7 [2] : vector<2x16x128xf32> to vector<2x16xf32>
    %14 = vector.shape_cast %13 : vector<2x16xf32> to vector<2x16x1xf32>
    %15 = tpu.reciprocal %14 : vector<2x16x1xf32> -> vector<2x16x1xf32>
    %16 = vector.broadcast %15 : vector<2x16x1xf32> to vector<2x16x128xf32>
    %17 = arith.mulf %12, %16 : vector<2x16x128xf32>
    %c0_8 = arith.constant 0 : index
    %c0_9 = arith.constant 0 : index
    %c0_10 = arith.constant 0 : index
    %18 = vector.load %arg7[%c0_8, %c0_9, %c0_10] : memref<2x16x128xf32, #tpu.memory_space<vmem>>, vector<2x16x128xf32>
    tpu.vector_store %arg7[%c0_8, %c0_9, %c0_10], %17 {strides = array<i32>} : memref<2x16x128xf32, #tpu.memory_space<vmem>>, vector<2x16x128xf32>,
    "tpu.trace_start"() <{level = 10 : i32, message = "bqk,bkh->bqh"}> : () -> ()
    %cst_11 = arith.constant dense<0.000000e+00> : vector<2x16x128xf32>
    %19 = tpu.matmul %17, %1, %cst_11 {dimension_numbers = #tpu.dot_dimension_numbers<[2], [1], [1], [2], [0, 0, 0, 1, 1, 2], [0], [0]>} : vector<2x16x128xf32>, vector<2x128x128xf32>, vector<2x16x128xf32> -> vector<2x16x128xf32>
    "tpu.trace_stop"() : () -> ()
    %20 = vector.shape_cast %19 : vector<2x16x128xf32> to vector<32x128xf32>
    %21 = vector.shape_cast %0 : vector<2x16x128xf32> to vector<32x128xf32>
    %c0_12 = arith.constant 0 : index
    %c0_13 = arith.constant 0 : index
    %c0_14 = arith.constant 0 : index
    %22 = vector.load %arg4[%c0_12, %c0_13, %c0_14] : memref<2x128x128xf32, #tpu.memory_space<vmem>>, vector<1x128x128xf32>
    %23 = vector.shape_cast %22 : vector<1x128x128xf32> to vector<128x128xf32>
    %cst_15 = arith.constant dense<0.000000e+00> : vector<32x128xf32>
    %24 = tpu.matmul %20, %23, %cst_15 {dimension_numbers = #tpu.dot_dimension_numbers<[1], [0], [0], [1], [0, 0, 1, 1], [], []>} : vector<32x128xf32>, vector<128x128xf32>, vector<32x128xf32> -> vector<32x128xf32>
    %c1 = arith.constant 1 : index
    %c0_16 = arith.constant 0 : index
    %c0_17 = arith.constant 0 : index
    %25 = vector.load %arg4[%c1, %c0_16, %c0_17] : memref<2x128x128xf32, #tpu.memory_space<vmem>>, vector<1x128x128xf32>
    %26 = vector.shape_cast %25 : vector<1x128x128xf32> to vector<128x128xf32>
    %cst_18 = arith.constant dense<0.000000e+00> : vector<32x128xf32>
    %27 = tpu.matmul %21, %26, %cst_18 {dimension_numbers = #tpu.dot_dimension_numbers<[1], [0], [0], [1], [0, 0, 1, 1], [], []>} : vector<32x128xf32>, vector<128x128xf32>, vector<32x128xf32> -> vector<32x128xf32>
    %28 = arith.addf %24, %27 : vector<32x128xf32>
    %c0_19 = arith.constant 0 : index
    %c0_20 = arith.constant 0 : index
    %29 = vector.load %arg5[%c0_19, %c0_20] : memref<1x128xf32, #tpu.memory_space<vmem>>, vector<1x128xf32>
    %30 = vector.broadcast %29 : vector<1x128xf32> to vector<32x128xf32>
    %31 = arith.addf %28, %30 : vector<32x128xf32>
    %32 = math.tanh %31 : vector<32x128xf32>
    %33 = vector.shape_cast %32 : vector<32x128xf32> to vector<2x16x128xf32>
    %c0_21 = arith.constant 0 : index
    %c0_22 = arith.constant 0 : index
    %c0_23 = arith.constant 0 : index
    %34 = vector.load %arg6[%c0_21, %c0_22, %c0_23] : memref<2x16x128xf32, #tpu.memory_space<vmem>>, vector<2x16x128xf32>
    tpu.vector_store %arg6[%c0_21, %c0_22, %c0_23], %33 {strides = array<i32>} : memref<2x16x128xf32, #tpu.memory_space<vmem>>, vector<2x16x128xf32>,
    return
  }
  func.func @transform_0(%arg0: i32, %arg1: i32) -> (i32, i32, i32) {
    %c0_i32 = arith.constant 0 : i32
    %c0_i32_0 = arith.constant 0 : i32
    return %arg0, %arg1, %c0_i32 : i32, i32, i32
  }
  func.func @transform_1(%arg0: i32, %arg1: i32) -> (i32, i32, i32) {
    %c0_i32 = arith.constant 0 : i32
    %c0_i32_0 = arith.constant 0 : i32
    %c0_i32_1 = arith.constant 0 : i32
    return %arg0, %c0_i32, %c0_i32_0 : i32, i32, i32
  }
  func.func @transform_2(%arg0: i32, %arg1: i32) -> (i32, i32, i32) {
    %c0_i32 = arith.constant 0 : i32
    %c0_i32_0 = arith.constant 0 : i32
    %c0_i32_1 = arith.constant 0 : i32
    %c0_i32_2 = arith.constant 0 : i32
    return %c0_i32, %c0_i32_0, %c0_i32_1 : i32, i32, i32
  }
  func.func @transform_3(%arg0: i32, %arg1: i32) -> (i32, i32) {
    %c0_i32 = arith.constant 0 : i32
    %c0_i32_0 = arith.constant 0 : i32
    %c0_i32_1 = arith.constant 0 : i32
    return %c0_i32, %c0_i32_0 : i32, i32
  }
  func.func @transform_4(%arg0: i32, %arg1: i32) -> (i32, i32, i32) {
    %c0_i32 = arith.constant 0 : i32
    %c0_i32_0 = arith.constant 0 : i32
    return %arg0, %arg1, %c0_i32 : i32, i32, i32
  }
  func.func @transform_5(%arg0: i32, %arg1: i32) -> (i32, i32, i32) {
    %c0_i32 = arith.constant 0 : i32
    %c0_i32_0 = arith.constant 0 : i32
    return %arg0, %arg1, %c0_i32 : i32, i32, i32
  }
}

module attributes {stable_mosaic.version = 11 : i64} {
  func.func @_attention_kernel(%arg0: i32, %arg1: i32, %arg2: memref<2x16x128xf32, #tpu.memory_space<vmem>>, %arg3: memref<2x128x128xf32, #tpu.memory_space<vmem>>, %arg4: memref<2x128x128xf32, #tpu.memory_space<vmem>>, %arg5: memref<1x128xf32, #tpu.memory_space<vmem>>, %arg6: memref<2x16x128xf32, #tpu.memory_space<vmem>>, %arg7: memref<2x16x128xf32, #tpu.memory_space<vmem>>) attributes {dimension_semantics = [#tpu.dimension_semantics<parallel>, #tpu.dimension_semantics<parallel>], iteration_bounds = array<i64: 1, 1>, scalar_prefetch = 0 : i64, scratch_operands = 0 : i64, tpu.core_type = #tpu.core_type<tc>, window_params = [{transform_indices = @transform_0, window_bounds = array<i64: 2, 16, 128>}, {transform_indices = @transform_1, window_bounds = array<i64: 2, 128, 128>}, {pipeline_mode = #tpu.pipeline_mode<synchronous>, transform_indices = @transform_2, window_bounds = array<i64: 2, 128, 128>}, {pipeline_mode = #tpu.pipeline_mode<synchronous>, transform_indices = @transform_3, window_bounds = array<i64: 1, 128>}, {transform_indices = @transform_4, window_bounds = array<i64: 2, 16, 128>}, {transform_indices = @transform_5, window_bounds = array<i64: 2, 16, 128>}]} {
    %c0 = arith.constant 0 : index
    %c0_0 = arith.constant 0 : index
    %c0_1 = arith.constant 0 : index
    %0 = vector.load %arg2[%c0, %c0_0, %c0_1] : memref<2x16x128xf32, #tpu.memory_space<vmem>>, vector<2x16x128xf32>
    %c0_2 = arith.constant 0 : index
    %c0_3 = arith.constant 0 : index
    %c0_4 = arith.constant 0 : index
    %1 = vector.load %arg3[%c0_2, %c0_3, %c0_4] : memref<2x128x128xf32, #tpu.memory_space<vmem>>, vector<2x128x128xf32>
    "tpu.trace_start"() <{level = 10 : i32, message = "bqh,bkh->bqk"}> : () -> ()
    %cst = arith.constant dense<0.000000e+00> : vector<2x16x128xf32>
    %2 = tpu.matmul %0, %1, %cst {dimension_numbers = #tpu.dot_dimension_numbers<[2], [2], [1], [1], [0, 0, 0, 1, 1, 1], [0], [0]>} : vector<2x16x128xf32>, vector<2x128x128xf32>, vector<2x16x128xf32> -> vector<2x16x128xf32>
    "tpu.trace_stop"() : () -> ()
    %3 = tpu.iota {dimensions = array<i32: 2>} : vector<2x16x128xi32>
    %c8_i32 = arith.constant 8 : i32
    %4 = vector.broadcast %c8_i32 : i32 to vector<2x16x128xi32>
    %5 = arith.cmpi slt, %3, %4 : vector<2x16x128xi32>
    %cst_5 = arith.constant -1.000000e+30 : f32
    %6 = vector.broadcast %cst_5 : f32 to vector<2x16x128xf32>
    %7 = arith.select %5, %2, %6 : vector<2x16x128xi1>, vector<2x16x128xf32>
    %cst_6 = arith.constant dense<0xFF800000> : vector<2x16xf32>
    %8 = vector.multi_reduction <maximumf>, %7, %cst_6 [2] : vector<2x16x128xf32> to vector<2x16xf32>
    %9 = vector.shape_cast %8 : vector<2x16xf32> to vector<2x16x1xf32>
    %10 = vector.broadcast %9 : vector<2x16x1xf32> to vector<2x16x128xf32>
    %11 = arith.subf %7, %10 : vector<2x16x128xf32>
    %12 = math.exp %11 : vector<2x16x128xf32>
    %cst_7 = arith.constant dense<0.000000e+00> : vector<2x16xf32>
    %13 = vector.multi_reduction <add>, %12, %cst_7 [2] : vector<2x16x128xf32> to vector<2x16xf32>
    %14 = vector.shape_cast %13 : vector<2x16xf32> to vector<2x16x1xf32>
    %15 = tpu.reciprocal %14 : vector<2x16x1xf32> -> vector<2x16x1xf32>
    %16 = vector.broadcast %15 : vector<2x16x1xf32> to vector<2x16x128xf32>
    %17 = arith.mulf %12, %16 : vector<2x16x128xf32>
    %c0_8 = arith.constant 0 : index
    %c0_9 = arith.constant 0 : index
    %c0_10 = arith.constant 0 : index
    %18 = vector.load %arg7[%c0_8, %c0_9, %c0_10] : memref<2x16x128xf32, #tpu.memory_space<vmem>>, vector<2x16x128xf32>
    tpu.vector_store %arg7[%c0_8, %c0_9, %c0_10], %17 {strides = array<i32>} : memref<2x16x128xf32, #tpu.memory_space<vmem>>, vector<2x16x128xf32>,
    "tpu.trace_start"() <{level = 10 : i32, message = "bqk,bkh->bqh"}> : () -> ()
    %cst_11 = arith.constant dense<0.000000e+00> : vector<2x16x128xf32>
    %19 = tpu.matmul %17, %1, %cst_11 {dimension_numbers = #tpu.dot_dimension_numbers<[2], [1], [1], [2], [0, 0, 0, 1, 1, 2], [0], [0]>} : vector<2x16x128xf32>, vector<2x128x128xf32>, vector<2x16x128xf32> -> vector<2x16x128xf32>
    "tpu.trace_stop"() : () -> ()
    %20 = vector.shape_cast %19 : vector<2x16x128xf32> to vector<32x128xf32>
    %21 = vector.shape_cast %0 : vector<2x16x128xf32> to vector<32x128xf32>
    %c0_12 = arith.constant 0 : index
    %c0_13 = arith.constant 0 : index
    %c0_14 = arith.constant 0 : index
    %22 = vector.load %arg4[%c0_12, %c0_13, %c0_14] : memref<2x128x128xf32, #tpu.memory_space<vmem>>, vector<1x128x128xf32>
    %23 = vector.shape_cast %22 : vector<1x128x128xf32> to vector<128x128xf32>
    %cst_15 = arith.constant dense<0.000000e+00> : vector<32x128xf32>
    %24 = tpu.matmul %20, %23, %cst_15 {dimension_numbers = #tpu.dot_dimension_numbers<[1], [0], [0], [1], [0, 0, 1, 1], [], []>} : vector<32x128xf32>, vector<128x128xf32>, vector<32x128xf32> -> vector<32x128xf32>
    %c1 = arith.constant 1 : index
    %c0_16 = arith.constant 0 : index
    %c0_17 = arith.constant 0 : index
    %25 = vector.load %arg4[%c1, %c0_16, %c0_17] : memref<2x128x128xf32, #tpu.memory_space<vmem>>, vector<1x128x128xf32>
    %26 = vector.shape_cast %25 : vector<1x128x128xf32> to vector<128x128xf32>
    %cst_18 = arith.constant dense<0.000000e+00> : vector<32x128xf32>
    %27 = tpu.matmul %21, %26, %cst_18 {dimension_numbers = #tpu.dot_dimension_numbers<[1], [0], [0], [1], [0, 0, 1, 1], [], []>} : vector<32x128xf32>, vector<128x128xf32>, vector<32x128xf32> -> vector<32x128xf32>
    %28 = arith.addf %24, %27 : vector<32x128xf32>
    %c0_19 = arith.constant 0 : index
    %c0_20 = arith.constant 0 : index
    %29 = vector.load %arg5[%c0_19, %c0_20] : memref<1x128xf32, #tpu.memory_space<vmem>>, vector<1x128xf32>
    %30 = vector.broadcast %29 : vector<1x128xf32> to vector<32x128xf32>
    %31 = arith.addf %28, %30 : vector<32x128xf32>
    %32 = math.tanh %31 : vector<32x128xf32>
    %33 = vector.shape_cast %32 : vector<32x128xf32> to vector<2x16x128xf32>
    %c0_21 = arith.constant 0 : index
    %c0_22 = arith.constant 0 : index
    %c0_23 = arith.constant 0 : index
    %34 = vector.load %arg6[%c0_21, %c0_22, %c0_23] : memref<2x16x128xf32, #tpu.memory_space<vmem>>, vector<2x16x128xf32>
    tpu.vector_store %arg6[%c0_21, %c0_22, %c0_23], %33 {strides = array<i32>} : memref<2x16x128xf32, #tpu.memory_space<vmem>>, vector<2x16x128xf32>,
    return
  }
  func.func @transform_0(%arg0: i32, %arg1: i32) -> (i32, i32, i32) {
    %c0_i32 = arith.constant 0 : i32
    %c0_i32_0 = arith.constant 0 : i32
    return %arg0, %arg1, %c0_i32 : i32, i32, i32
  }
  func.func @transform_1(%arg0: i32, %arg1: i32) -> (i32, i32, i32) {
    %c0_i32 = arith.constant 0 : i32
    %c0_i32_0 = arith.constant 0 : i32
    %c0_i32_1 = arith.constant 0 : i32
    return %arg0, %c0_i32, %c0_i32_0 : i32, i32, i32
  }
  func.func @transform_2(%arg0: i32, %arg1: i32) -> (i32, i32, i32) {
    %c0_i32 = arith.constant 0 : i32
    %c0_i32_0 = arith.constant 0 : i32
    %c0_i32_1 = arith.constant 0 : i32
    %c0_i32_2 = arith.constant 0 : i32
    return %c0_i32, %c0_i32_0, %c0_i32_1 : i32, i32, i32
  }
  func.func @transform_3(%arg0: i32, %arg1: i32) -> (i32, i32) {
    %c0_i32 = arith.constant 0 : i32
    %c0_i32_0 = arith.constant 0 : i32
    %c0_i32_1 = arith.constant 0 : i32
    return %c0_i32, %c0_i32_0 : i32, i32
  }
  func.func @transform_4(%arg0: i32, %arg1: i32) -> (i32, i32, i32) {
    %c0_i32 = arith.constant 0 : i32
    %c0_i32_0 = arith.constant 0 : i32
    return %arg0, %arg1, %c0_i32 : i32, i32, i32
  }
  func.func @transform_5(%arg0: i32, %arg1: i32) -> (i32, i32, i32) {
    %c0_i32 = arith.constant 0 : i32
    %c0_i32_0 = arith.constant 0 : i32
    return %arg0, %arg1, %c0_i32 : i32, i32, i32
  }
}

</mosaic_0001>

<llo_original>
// kernel: tpu_custom_call.1
$region0: #{tpu_custom_call.1}
  #allocation0 [shape = 'u32[]', space=smem, size = 0x4, offset = 0x4, fixed_abs, tag = 'smem constant byte address 0x4 - core index']
  #allocation1 [shape = 'u32[144,128]{1,0:T(1,128)}', space=vmem, size = 0x12000, scoped, tag = 'internal scratch']
  %s0 = inlined_call_operand.hbm [shape: f32[2,16,128], index: 0, kind: input, shape index: {}]
  %s1 = inlined_call_operand.hbm [shape: f32[2,128,128], index: 1, kind: input, shape index: {}]
  %s2 = inlined_call_operand.hbm [shape: f32[2,128,128], index: 2, kind: input, shape index: {}]
  %s3 = inlined_call_operand.vmem [shape: f32[1,128], index: 3, kind: input, shape index: {}]
  %s4 = inlined_call_operand.hbm [shape: f32[2,16,128], index: 4, kind: output, shape index: {0}]
  %s5 = inlined_call_operand.hbm [shape: f32[2,16,128], index: 5, kind: output, shape index: {1}]
  %6 = xla_tuple %s4, %s5
  %s7 = sld [smem:[#allocation0]]
  $region46: #{tpu_custom_call.1} parent=0
    _
  %s9 = ssub.s32 1, %s7
  %s10 = scalar_select 0, %s9, %s7
  $region1: #{tpu_custom_call.1} parent=0
    #allocation2 [shape = 'u8[16384]{0}', space=vmem, size = 0x4000, scoped, tag = 'input window, operand 0, single buffered']
    #allocation3 [shape = 's32[1]{0}', space=sflag, size = 0x4, scoped, tag = 'scoped memory for tpu_custom_call.1']
    #allocation4 [shape = 's32[1]{0}', space=sflag, size = 0x4, scoped, tag = 'scoped memory for tpu_custom_call.1']
    #allocation5 [shape = 'u8[131072]{0}', space=vmem, size = 0x20000, scoped, tag = 'input window, operand 1, single buffered']
    #allocation6 [shape = 's32[1]{0}', space=sflag, size = 0x4, scoped, tag = 'scoped memory for tpu_custom_call.1']
    #allocation7 [shape = 'u8[131072]{0}', space=vmem, size = 0x20000, scoped, tag = 'input window, operand 2, single buffered']
    #allocation8 [shape = 'u8[16384]{0}', space=vmem, size = 0x4000, scoped, tag = 'output window, operand 0, single buffered']
    #allocation9 [shape = 'u8[16384]{0}', space=vmem, size = 0x4000, scoped, tag = 'output window, operand 1, single buffered']
    #allocation10 [shape = 's32[1]{0}', space=sflag, size = 0x4, scoped, tag = 'scoped memory for tpu_custom_call.1']
    %11 = vsyncpa [#allocation3], 0
    %12 = vsyncpa [#allocation6], 0
    %13 = vsyncpa [#allocation4], 0
    %14 = vsyncpa [#allocation10], 0
    // Predicated region
    $region2: #{tpu_custom_call.1} parent=1 // pred_check
      _
    $region3: #{tpu_custom_call.1} parent=1 // pred_check_branch
      %16 = sbr.rel (0) target = $region5
    $region4: #{tpu_custom_call.1} parent=1 // pred_region
      %s18 = ssub.s32 512, 512
      %19 = vsyncadd [#allocation3], %s18
      %s20 = sshll.u32 [#allocation2], 4
      %s21 = int_to_ptr.vmem [resolvable:$true] %s20
      %26 = dma.hbm_to_vmem [thread:$0]  %s0, 512, %s21, [#allocation3], 128, 128, 8
    $region5: #{tpu_custom_call.1} parent=1 // pred_fallthru
      _
    // Predicated region
    $region6: #{tpu_custom_call.1} parent=1 // pred_check
      _
    $region7: #{tpu_custom_call.1} parent=1 // pred_check_branch
      %28 = sbr.rel (0) target = $region9
    $region8: #{tpu_custom_call.1} parent=1 // pred_region
      %s30 = ssub.s32 4096, 4096
      %31 = vsyncadd [#allocation6], %s30
      %s32 = sshll.u32 [#allocation5], 4
      %s33 = int_to_ptr.vmem [resolvable:$true] %s32
      %38 = dma.hbm_to_vmem [thread:$0]  %s1, 4096, %s33, [#allocation6], 128, 128, 8
    $region9: #{tpu_custom_call.1} parent=1 // pred_fallthru
      _
    // Predicated region
    $region10: #{tpu_custom_call.1} parent=1 // pred_check
      _
    $region11: #{tpu_custom_call.1} parent=1 // pred_check_branch
      %40 = sbr.rel (0) target = $region13
    $region12: #{tpu_custom_call.1} parent=1 // pred_region
      %s42 = ssub.s32 4096, 4096
      %43 = vsyncadd [#allocation6], %s42
      %s44 = sshll.u32 [#allocation7], 4
      %s45 = int_to_ptr.vmem [resolvable:$true] %s44
      %50 = dma.hbm_to_vmem [thread:$0]  %s2, 4096, %s45, [#allocation6], 128, 128, 8
    $region13: #{tpu_custom_call.1} parent=1 // pred_fallthru
      _
    // Predicated region
    $region14: #{tpu_custom_call.1} parent=1 // pred_check
      _
    $region15: #{tpu_custom_call.1} parent=1 // pred_check_branch
      %52 = sbr.rel (0) target = $region17
    $region16: #{tpu_custom_call.1} parent=1 // pred_region
      _
    $region17: #{tpu_custom_call.1} parent=1 // pred_fallthru
      _
    // Predicated region
    $region18: #{tpu_custom_call.1} parent=1 // pred_check
      _
    $region19: #{tpu_custom_call.1} parent=1 // pred_check_branch
      %54 = sbr.rel (0) target = $region21
    $region20: #{tpu_custom_call.1} parent=1 // pred_region
      %55 = dma.done [#allocation3], 512
    $region21: #{tpu_custom_call.1} parent=1 // pred_fallthru
      _
    // Predicated region
    $region22: #{tpu_custom_call.1} parent=1 // pred_check
      _
    $region23: #{tpu_custom_call.1} parent=1 // pred_check_branch
      %57 = sbr.rel (0) target = $region25
    $region24: #{tpu_custom_call.1} parent=1 // pred_region
      %58 = dma.done [#allocation6], 4096
    $region25: #{tpu_custom_call.1} parent=1 // pred_fallthru
      _
    // Predicated region
    $region26: #{tpu_custom_call.1} parent=1 // pred_check
      _
    $region27: #{tpu_custom_call.1} parent=1 // pred_check_branch
      %60 = sbr.rel (0) target = $region29
    $region28: #{tpu_custom_call.1} parent=1 // pred_region
      %61 = dma.done [#allocation6], 4096
    $region29: #{tpu_custom_call.1} parent=1 // pred_fallthru
      _
    %v62 = vld [vmem:[#allocation2] sm:$0xff]
    %v63 = vld [vmem:[#allocation2 + $0x8] sm:$0xff]
    %v64 = vld [vmem:[#allocation2 + $0x10] sm:$0xff]
    %v65 = vld [vmem:[#allocation2 + $0x18] sm:$0xff]
    %v66 = vld [vmem:[#allocation5] sm:$0xff]
    %v67 = vld [vmem:[#allocation5 + $0x8] sm:$0xff]
    %v68 = vld [vmem:[#allocation5 + $0x10] sm:$0xff]
    %v69 = vld [vmem:[#allocation5 + $0x18] sm:$0xff]
    %v70 = vld [vmem:[#allocation5 + $0x20] sm:$0xff]
    %v71 = vld [vmem:[#allocation5 + $0x28] sm:$0xff]
    %v72 = vld [vmem:[#allocation5 + $0x30] sm:$0xff]
    %v73 = vld [vmem:[#allocation5 + $0x38] sm:$0xff]
    %v74 = vld [vmem:[#allocation5 + $0x40] sm:$0xff]
    %v75 = vld [vmem:[#allocation5 + $0x48] sm:$0xff]
    %v76 = vld [vmem:[#allocation5 + $0x50] sm:$0xff]
    %v77 = vld [vmem:[#allocation5 + $0x58] sm:$0xff]
    %v78 = vld [vmem:[#allocation5 + $0x60] sm:$0xff]
    %v79 = vld [vmem:[#allocation5 + $0x68] sm:$0xff]
    %v80 = vld [vmem:[#allocation5 + $0x70] sm:$0xff]
    %v81 = vld [vmem:[#allocation5 + $0x78] sm:$0xff]
    %v82 = vld [vmem:[#allocation5 + $0x80] sm:$0xff]
    %v83 = vld [vmem:[#allocation5 + $0x88] sm:$0xff]
    %v84 = vld [vmem:[#allocation5 + $0x90] sm:$0xff]
    %v85 = vld [vmem:[#allocation5 + $0x98] sm:$0xff]
    %v86 = vld [vmem:[#allocation5 + $0xa0] sm:$0xff]
    %v87 = vld [vmem:[#allocation5 + $0xa8] sm:$0xff]
    %v88 = vld [vmem:[#allocation5 + $0xb0] sm:$0xff]
    %v89 = vld [vmem:[#allocation5 + $0xb8] sm:$0xff]
    %v90 = vld [vmem:[#allocation5 + $0xc0] sm:$0xff]
    %v91 = vld [vmem:[#allocation5 + $0xc8] sm:$0xff]
    %v92 = vld [vmem:[#allocation5 + $0xd0] sm:$0xff]
    %v93 = vld [vmem:[#allocation5 + $0xd8] sm:$0xff]
    %v94 = vld [vmem:[#allocation5 + $0xe0] sm:$0xff]
    %v95 = vld [vmem:[#allocation5 + $0xe8] sm:$0xff]
    %v96 = vld [vmem:[#allocation5 + $0xf0] sm:$0xff]
    %v97 = vld [vmem:[#allocation5 + $0xf8] sm:$0xff]
    %98 = vmatprep.subr.mxu0 0.0
    %99 = vmatpush1.xpose.msra.mxu0 %v66
    %100 = vmatprep.subr.mxu0 0.0
    %101 = vmatpush1.xpose.msra.mxu0 %v67
    %102 = vmatprep.subr.mxu0 0.0
    %103 = vmatpush1.xpose.msra.mxu0 %v68
    %104 = vmatprep.subr.mxu0 0.0
    %105 = vmatpush1.xpose.msra.mxu0 %v69
    %106 = vmatprep.subr.mxu0 0.0
    %107 = vmatpush1.xpose.msra.mxu0 %v70
    %108 = vmatprep.subr.mxu0 0.0
    %109 = vmatpush1.xpose.msra.mxu0 %v71
    %110 = vmatprep.subr.mxu0 0.0
    %111 = vmatpush1.xpose.msra.mxu0 %v72
    %112 = vmatprep.subr.mxu0 0.0
    %113 = vmatpush1.xpose.msra.mxu0 %v73
    %114 = vmatprep.subr.mxu0 0.0
    %115 = vmatpush1.xpose.msra.mxu0 %v74
    %116 = vmatprep.subr.mxu0 0.0
    %117 = vmatpush1.xpose.msra.mxu0 %v75
    %118 = vmatprep.subr.mxu0 0.0
    %119 = vmatpush1.xpose.msra.mxu0 %v76
    %120 = vmatprep.subr.mxu0 0.0
    %121 = vmatpush1.xpose.msra.mxu0 %v77
    %122 = vmatprep.subr.mxu0 0.0
    %123 = vmatpush1.xpose.msra.mxu0 %v78
    %124 = vmatprep.subr.mxu0 0.0
    %125 = vmatpush1.xpose.msra.mxu0 %v79
    %126 = vmatprep.subr.mxu0 0.0
    %127 = vmatpush1.xpose.msra.mxu0 %v80
    %128 = vmatprep.subr.mxu0 0.0
    %129 = vmatpush1.xpose.msra.mxu0 %v81
    %130 = vmatprep.subr.mxu0 0.0
    %131 = vmatpush1.xpose.msra.mxu0 0.0
    %132 = vmatprep.subr.mxu0 0.0
    %133 = vmatpush1.xpose.msra.mxu0 0.0
    %134 = vmatprep.subr.mxu0 0.0
    %135 = vmatpush1.xpose.msra.mxu0 0.0
    %136 = vmatprep.subr.mxu0 0.0
    %137 = vmatpush1.xpose.msra.mxu0 0.0
    %138 = vmatprep.subr.mxu0 0.0
    %139 = vmatpush1.xpose.msra.mxu0 0.0
    %140 = vmatprep.subr.mxu0 0.0
    %141 = vmatpush1.xpose.msra.mxu0 0.0
    %142 = vmatprep.subr.mxu0 0.0
    %143 = vmatpush1.xpose.msra.mxu0 0.0
    %144 = vmatprep.subr.mxu0 0.0
    %145 = vmatpush1.xpose.msra.mxu0 0.0
    %146 = vmatprep.subr.mxu0 0.0
    %147 = vmatpush1.xpose.msra.mxu0 0.0
    %148 = vmatprep.subr.mxu0 0.0
    %149 = vmatpush1.xpose.msra.mxu0 0.0
    %150 = vmatprep.subr.mxu0 0.0
    %151 = vmatpush1.xpose.msra.mxu0 0.0
    %152 = vmatprep.subr.mxu0 0.0
    %153 = vmatpush1.xpose.msra.mxu0 0.0
    %154 = vmatprep.subr.mxu0 0.0
    %155 = vmatpush1.xpose.msra.mxu0 0.0
    %156 = vmatprep.subr.mxu0 0.0
    %157 = vmatpush1.xpose.msra.mxu0 0.0
    %158 = vmatprep.subr.mxu0 0.0
    %159 = vmatpush1.xpose.msra.mxu0 0.0
    %160 = vmatprep.subr.mxu0 0.0
    %161 = vmatpush1.xpose.msra.mxu0 0.0
    %162 = vmatprep.mubr.f32.mxu0 0.0
    %163 = vmatmul.mubr.f32.gmra.mrb[0].mxu0 %v62
    %v164 = vpop.f32.mrb[0].mxu0
    %v165 = vadd.f32 0.0, %v164
    %v166 = vpop.f32.mrb[0].mxu0
    %167 = vmatprep.mubr.f32.mxu0 0.0
    %168 = vmatmul.mubr.f32.gmra.mrb[0].mxu0 %v63
    %v169 = vpop.f32.mrb[0].mxu0
    %v170 = vadd.f32 0.0, %v169
    %v171 = vpop.f32.mrb[0].mxu0
    %172 = vdwg.mxu0
    %173 = vmatprep.subr.mxu0 0.0
    %174 = vmatpush1.xpose.msra.mxu0 %v82
    %175 = vmatprep.subr.mxu0 0.0
    %176 = vmatpush1.xpose.msra.mxu0 %v83
    %177 = vmatprep.subr.mxu0 0.0
    %178 = vmatpush1.xpose.msra.mxu0 %v84
    %179 = vmatprep.subr.mxu0 0.0
    %180 = vmatpush1.xpose.msra.mxu0 %v85
    %181 = vmatprep.subr.mxu0 0.0
    %182 = vmatpush1.xpose.msra.mxu0 %v86
    %183 = vmatprep.subr.mxu0 0.0
    %184 = vmatpush1.xpose.msra.mxu0 %v87
    %185 = vmatprep.subr.mxu0 0.0
    %186 = vmatpush1.xpose.msra.mxu0 %v88
    %187 = vmatprep.subr.mxu0 0.0
    %188 = vmatpush1.xpose.msra.mxu0 %v89
    %189 = vmatprep.subr.mxu0 0.0
    %190 = vmatpush1.xpose.msra.mxu0 %v90
    %191 = vmatprep.subr.mxu0 0.0
    %192 = vmatpush1.xpose.msra.mxu0 %v91
    %193 = vmatprep.subr.mxu0 0.0
    %194 = vmatpush1.xpose.msra.mxu0 %v92
    %195 = vmatprep.subr.mxu0 0.0
    %196 = vmatpush1.xpose.msra.mxu0 %v93
    %197 = vmatprep.subr.mxu0 0.0
    %198 = vmatpush1.xpose.msra.mxu0 %v94
    %199 = vmatprep.subr.mxu0 0.0
    %200 = vmatpush1.xpose.msra.mxu0 %v95
    %201 = vmatprep.subr.mxu0 0.0
    %202 = vmatpush1.xpose.msra.mxu0 %v96
    %203 = vmatprep.subr.mxu0 0.0
    %204 = vmatpush1.xpose.msra.mxu0 %v97
    %205 = vmatprep.subr.mxu0 0.0
    %206 = vmatpush1.xpose.msra.mxu0 0.0
    %207 = vmatprep.subr.mxu0 0.0
    %208 = vmatpush1.xpose.msra.mxu0 0.0
    %209 = vmatprep.subr.mxu0 0.0
    %210 = vmatpush1.xpose.msra.mxu0 0.0
    %211 = vmatprep.subr.mxu0 0.0
    %212 = vmatpush1.xpose.msra.mxu0 0.0
    %213 = vmatprep.subr.mxu0 0.0
    %214 = vmatpush1.xpose.msra.mxu0 0.0
    %215 = vmatprep.subr.mxu0 0.0
    %216 = vmatpush1.xpose.msra.mxu0 0.0
    %217 = vmatprep.subr.mxu0 0.0
    %218 = vmatpush1.xpose.msra.mxu0 0.0
    %219 = vmatprep.subr.mxu0 0.0
    %220 = vmatpush1.xpose.msra.mxu0 0.0
    %221 = vmatprep.subr.mxu0 0.0
    %222 = vmatpush1.xpose.msra.mxu0 0.0
    %223 = vmatprep.subr.mxu0 0.0
    %224 = vmatpush1.xpose.msra.mxu0 0.0
    %225 = vmatprep.subr.mxu0 0.0
    %226 = vmatpush1.xpose.msra.mxu0 0.0
    %227 = vmatprep.subr.mxu0 0.0
    %228 = vmatpush1.xpose.msra.mxu0 0.0
    %229 = vmatprep.subr.mxu0 0.0
    %230 = vmatpush1.xpose.msra.mxu0 0.0
    %231 = vmatprep.subr.mxu0 0.0
    %232 = vmatpush1.xpose.msra.mxu0 0.0
    %233 = vmatprep.subr.mxu0 0.0
    %234 = vmatpush1.xpose.msra.mxu0 0.0
    %235 = vmatprep.subr.mxu0 0.0
    %236 = vmatpush1.xpose.msra.mxu0 0.0
    %237 = vmatprep.mubr.f32.mxu0 0.0
    %238 = vmatmul.mubr.f32.gmra.mrb[0].mxu0 %v64
    %v239 = vpop.f32.mrb[0].mxu0
    %v240 = vadd.f32 0.0, %v239
    %v241 = vpop.f32.mrb[0].mxu0
    %242 = vmatprep.mubr.f32.mxu0 0.0
    %243 = vmatmul.mubr.f32.gmra.mrb[0].mxu0 %v65
    %v244 = vpop.f32.mrb[0].mxu0
    %v245 = vadd.f32 0.0, %v244
    %v246 = vpop.f32.mrb[0].mxu0
    %247 = vdwg.mxu0
    %v248 = vlaneseq
    %v249 = vand.u32 %v248, 127
    %vm250 = vcmp.lt.s32.totalorder %v249, 8
    %v251 = vsel %vm250, %v165, -1e+30
    %v252 = vsel %vm250, %v170, -1e+30
    %v253 = vsel %vm250, %v240, -1e+30
    %v254 = vsel %vm250, %v245, -1e+30
    %255 = vmax.xlane.f32.xlu0 %v251
    %v256 = vpop.xlane.xlu0 %255
    %257 = vmax.xlane.f32.xlu0 %v252
    %v258 = vpop.xlane.xlu0 %257
    %259 = vmax.xlane.f32.xlu0 %v253
    %v260 = vpop.xlane.xlu0 %259
    %261 = vmax.xlane.f32.xlu0 %v254
    %v262 = vpop.xlane.xlu0 %261
    %v263 = vsub.f32 %v251, %v256
    %v264 = vsub.f32 %v252, %v258
    %v265 = vsub.f32 %v253, %v260
    %v266 = vsub.f32 %v254, %v262
    %v267 = vmul.f32 %v263, 1.442695
    %v268 = vpow.pop %v267
    %v269 = vmul.f32 %v264, 1.442695
    %v270 = vpow.pop %v269
    %v271 = vmul.f32 %v265, 1.442695
    %v272 = vpow.pop %v271
    %v273 = vmul.f32 %v266, 1.442695
    %v274 = vpow.pop %v273
    %275 = vadd.xlane.f32.xlu0 %v268
    %v276 = vpop.xlane.xlu0 %275
    %277 = vadd.xlane.f32.xlu0 %v270
    %v278 = vpop.xlane.xlu0 %277
    %279 = vadd.xlane.f32.xlu0 %v272
    %v280 = vpop.xlane.xlu0 %279
    %281 = vadd.xlane.f32.xlu0 %v274
    %v282 = vpop.xlane.xlu0 %281
    %v283 = vrcp.pop %v276
    %v284 = vrcp.pop %v278
    %v285 = vrcp.pop %v280
    %v286 = vrcp.pop %v282
    %v287 = vmul.f32 %v268, %v283
    %v288 = vmul.f32 %v270, %v284
    %v289 = vmul.f32 %v272, %v285
    %v290 = vmul.f32 %v274, %v286
    %291 = vst [vmem:[#allocation9] sm:$0xff] %v287
    %292 = vst [vmem:[#allocation9 + $0x8] sm:$0xff] %v288
    %293 = vst [vmem:[#allocation9 + $0x10] sm:$0xff] %v289
    %294 = vst [vmem:[#allocation9 + $0x18] sm:$0xff] %v290
    %295 = vmatprep.subr.mxu0 0.0
    %296 = vmatpush1.msra.mxu0 %v66
    %297 = vmatprep.subr.mxu0 0.0
    %298 = vmatpush1.msra.mxu0 %v67
    %299 = vmatprep.subr.mxu0 0.0
    %300 = vmatpush1.msra.mxu0 %v68
    %301 = vmatprep.subr.mxu0 0.0
    %302 = vmatpush1.msra.mxu0 %v69
    %303 = vmatprep.subr.mxu0 0.0
    %304 = vmatpush1.msra.mxu0 %v70
    %305 = vmatprep.subr.mxu0 0.0
    %306 = vmatpush1.msra.mxu0 %v71
    %307 = vmatprep.subr.mxu0 0.0
    %308 = vmatpush1.msra.mxu0 %v72
    %309 = vmatprep.subr.mxu0 0.0
    %310 = vmatpush1.msra.mxu0 %v73
    %311 = vmatprep.subr.mxu0 0.0
    %312 = vmatpush1.msra.mxu0 %v74
    %313 = vmatprep.subr.mxu0 0.0
    %314 = vmatpush1.msra.mxu0 %v75
    %315 = vmatprep.subr.mxu0 0.0
    %316 = vmatpush1.msra.mxu0 %v76
    %317 = vmatprep.subr.mxu0 0.0
    %318 = vmatpush1.msra.mxu0 %v77
    %319 = vmatprep.subr.mxu0 0.0
    %320 = vmatpush1.msra.mxu0 %v78
    %321 = vmatprep.subr.mxu0 0.0
    %322 = vmatpush1.msra.mxu0 %v79
    %323 = vmatprep.subr.mxu0 0.0
    %324 = vmatpush1.msra.mxu0 %v80
    %325 = vmatprep.subr.mxu0 0.0
    %326 = vmatpush1.msra.mxu0 %v81
    %327 = vmatprep.subr.mxu0 0.0
    %328 = vmatpush1.msra.mxu0 0.0
    %329 = vmatprep.subr.mxu0 0.0
    %330 = vmatpush1.msra.mxu0 0.0
    %331 = vmatprep.subr.mxu0 0.0
    %332 = vmatpush1.msra.mxu0 0.0
    %333 = vmatprep.subr.mxu0 0.0
    %334 = vmatpush1.msra.mxu0 0.0
    %335 = vmatprep.subr.mxu0 0.0
    %336 = vmatpush1.msra.mxu0 0.0
    %337 = vmatprep.subr.mxu0 0.0
    %338 = vmatpush1.msra.mxu0 0.0
    %339 = vmatprep.subr.mxu0 0.0
    %340 = vmatpush1.msra.mxu0 0.0
    %341 = vmatprep.subr.mxu0 0.0
    %342 = vmatpush1.msra.mxu0 0.0
    %343 = vmatprep.subr.mxu0 0.0
    %344 = vmatpush1.msra.mxu0 0.0
    %345 = vmatprep.subr.mxu0 0.0
    %346 = vmatpush1.msra.mxu0 0.0
    %347 = vmatprep.subr.mxu0 0.0
    %348 = vmatpush1.msra.mxu0 0.0
    %349 = vmatprep.subr.mxu0 0.0
    %350 = vmatpush1.msra.mxu0 0.0
    %351 = vmatprep.subr.mxu0 0.0
    %352 = vmatpush1.msra.mxu0 0.0
    %353 = vmatprep.subr.mxu0 0.0
    %354 = vmatpush1.msra.mxu0 0.0
    %355 = vmatprep.subr.mxu0 0.0
    %356 = vmatpush1.msra.mxu0 0.0
    %357 = vmatprep.subr.mxu0 0.0
    %358 = vmatpush1.msra.mxu0 0.0
    %359 = vmatprep.mubr.f32.mxu0 0.0
    %360 = vmatmul.mubr.f32.gmra.mrb[0].mxu0 %v287
    %v361 = vpop.f32.mrb[0].mxu0
    %v362 = vadd.f32 0.0, %v361
    %v363 = vpop.f32.mrb[0].mxu0
    %364 = vmatprep.mubr.f32.mxu0 0.0
    %365 = vmatmul.mubr.f32.gmra.mrb[0].mxu0 %v288
    %v366 = vpop.f32.mrb[0].mxu0
    %v367 = vadd.f32 0.0, %v366
    %v368 = vpop.f32.mrb[0].mxu0
    %369 = vdwg.mxu0
    %370 = vmatprep.subr.mxu0 0.0
    %371 = vmatpush1.msra.mxu0 %v82
    %372 = vmatprep.subr.mxu0 0.0
    %373 = vmatpush1.msra.mxu0 %v83
    %374 = vmatprep.subr.mxu0 0.0
    %375 = vmatpush1.msra.mxu0 %v84
    %376 = vmatprep.subr.mxu0 0.0
    %377 = vmatpush1.msra.mxu0 %v85
    %378 = vmatprep.subr.mxu0 0.0
    %379 = vmatpush1.msra.mxu0 %v86
    %380 = vmatprep.subr.mxu0 0.0
    %381 = vmatpush1.msra.mxu0 %v87
    %382 = vmatprep.subr.mxu0 0.0
    %383 = vmatpush1.msra.mxu0 %v88
    %384 = vmatprep.subr.mxu0 0.0
    %385 = vmatpush1.msra.mxu0 %v89
    %386 = vmatprep.subr.mxu0 0.0
    %387 = vmatpush1.msra.mxu0 %v90
    %388 = vmatprep.subr.mxu0 0.0
    %389 = vmatpush1.msra.mxu0 %v91
    %390 = vmatprep.subr.mxu0 0.0
    %391 = vmatpush1.msra.mxu0 %v92
    %392 = vmatprep.subr.mxu0 0.0
    %393 = vmatpush1.msra.mxu0 %v93
    %394 = vmatprep.subr.mxu0 0.0
    %395 = vmatpush1.msra.mxu0 %v94
    %396 = vmatprep.subr.mxu0 0.0
    %397 = vmatpush1.msra.mxu0 %v95
    %398 = vmatprep.subr.mxu0 0.0
    %399 = vmatpush1.msra.mxu0 %v96
    %400 = vmatprep.subr.mxu0 0.0
    %401 = vmatpush1.msra.mxu0 %v97
    %402 = vmatprep.subr.mxu0 0.0
    %403 = vmatpush1.msra.mxu0 0.0
    %404 = vmatprep.subr.mxu0 0.0
    %405 = vmatpush1.msra.mxu0 0.0
    %406 = vmatprep.subr.mxu0 0.0
    %407 = vmatpush1.msra.mxu0 0.0
    %408 = vmatprep.subr.mxu0 0.0
    %409 = vmatpush1.msra.mxu0 0.0
    %410 = vmatprep.subr.mxu0 0.0
    %411 = vmatpush1.msra.mxu0 0.0
    %412 = vmatprep.subr.mxu0 0.0
    %413 = vmatpush1.msra.mxu0 0.0
    %414 = vmatprep.subr.mxu0 0.0
    %415 = vmatpush1.msra.mxu0 0.0
    %416 = vmatprep.subr.mxu0 0.0
    %417 = vmatpush1.msra.mxu0 0.0
    %418 = vmatprep.subr.mxu0 0.0
    %419 = vmatpush1.msra.mxu0 0.0
    %420 = vmatprep.subr.mxu0 0.0
    %421 = vmatpush1.msra.mxu0 0.0
    %422 = vmatprep.subr.mxu0 0.0
    %423 = vmatpush1.msra.mxu0 0.0
    %424 = vmatprep.subr.mxu0 0.0
    %425 = vmatpush1.msra.mxu0 0.0
    %426 = vmatprep.subr.mxu0 0.0
    %427 = vmatpush1.msra.mxu0 0.0
    %428 = vmatprep.subr.mxu0 0.0
    %429 = vmatpush1.msra.mxu0 0.0
    %430 = vmatprep.subr.mxu0 0.0
    %431 = vmatpush1.msra.mxu0 0.0
    %432 = vmatprep.subr.mxu0 0.0
    %433 = vmatpush1.msra.mxu0 0.0
    %434 = vmatprep.mubr.f32.mxu0 0.0
    %435 = vmatmul.mubr.f32.gmra.mrb[0].mxu0 %v289
    %v436 = vpop.f32.mrb[0].mxu0
    %v437 = vadd.f32 0.0, %v436
    %v438 = vpop.f32.mrb[0].mxu0
    %439 = vmatprep.mubr.f32.mxu0 0.0
    %440 = vmatmul.mubr.f32.gmra.mrb[0].mxu0 %v290
    %v441 = vpop.f32.mrb[0].mxu0
    %v442 = vadd.f32 0.0, %v441
    %v443 = vpop.f32.mrb[0].mxu0
    %444 = vdwg.mxu0
    %v445 = vld [vmem:[#allocation7] sm:$0xff]
    %v446 = vld [vmem:[#allocation7 + $0x8] sm:$0xff]
    %v447 = vld [vmem:[#allocation7 + $0x10] sm:$0xff]
    %v448 = vld [vmem:[#allocation7 + $0x18] sm:$0xff]
    %v449 = vld [vmem:[#allocation7 + $0x20] sm:$0xff]
    %v450 = vld [vmem:[#allocation7 + $0x28] sm:$0xff]
    %v451 = vld [vmem:[#allocation7 + $0x30] sm:$0xff]
    %v452 = vld [vmem:[#allocation7 + $0x38] sm:$0xff]
    %v453 = vld [vmem:[#allocation7 + $0x40] sm:$0xff]
    %v454 = vld [vmem:[#allocation7 + $0x48] sm:$0xff]
    %v455 = vld [vmem:[#allocation7 + $0x50] sm:$0xff]
    %v456 = vld [vmem:[#allocation7 + $0x58] sm:$0xff]
    %v457 = vld [vmem:[#allocation7 + $0x60] sm:$0xff]
    %v458 = vld [vmem:[#allocation7 + $0x68] sm:$0xff]
    %v459 = vld [vmem:[#allocation7 + $0x70] sm:$0xff]
    %v460 = vld [vmem:[#allocation7 + $0x78] sm:$0xff]
    %s461 = scalar_lea.vmem [#allocation7], 128
    %v462 = vld [vmem:[%s461] sm:$0xff]
    %v463 = vld [vmem:[%s461 + $0x8] sm:$0xff]
    %v464 = vld [vmem:[%s461 + $0x10] sm:$0xff]
    %v465 = vld [vmem:[%s461 + $0x18] sm:$0xff]
    %v466 = vld [vmem:[%s461 + $0x20] sm:$0xff]
    %v467 = vld [vmem:[%s461 + $0x28] sm:$0xff]
    %v468 = vld [vmem:[%s461 + $0x30] sm:$0xff]
    %v469 = vld [vmem:[%s461 + $0x38] sm:$0xff]
    %v470 = vld [vmem:[%s461 + $0x40] sm:$0xff]
    %v471 = vld [vmem:[%s461 + $0x48] sm:$0xff]
    %v472 = vld [vmem:[%s461 + $0x50] sm:$0xff]
    %v473 = vld [vmem:[%s461 + $0x58] sm:$0xff]
    %v474 = vld [vmem:[%s461 + $0x60] sm:$0xff]
    %v475 = vld [vmem:[%s461 + $0x68] sm:$0xff]
    %v476 = vld [vmem:[%s461 + $0x70] sm:$0xff]
    %v477 = vld [vmem:[%s461 + $0x78] sm:$0xff]
    %478 = vmatprep.subr.mxu0 0.0
    %479 = vmatpush1.msra.mxu0 %v462
    %480 = vmatprep.subr.mxu0 0.0
    %481 = vmatpush1.msra.mxu0 %v463
    %482 = vmatprep.subr.mxu0 0.0
    %483 = vmatpush1.msra.mxu0 %v464
    %484 = vmatprep.subr.mxu0 0.0
    %485 = vmatpush1.msra.mxu0 %v465
    %486 = vmatprep.subr.mxu0 0.0
    %487 = vmatpush1.msra.mxu0 %v466
    %488 = vmatprep.subr.mxu0 0.0
    %489 = vmatpush1.msra.mxu0 %v467
    %490 = vmatprep.subr.mxu0 0.0
    %491 = vmatpush1.msra.mxu0 %v468
    %492 = vmatprep.subr.mxu0 0.0
    %493 = vmatpush1.msra.mxu0 %v469
    %494 = vmatprep.subr.mxu0 0.0
    %495 = vmatpush1.msra.mxu0 %v470
    %496 = vmatprep.subr.mxu0 0.0
    %497 = vmatpush1.msra.mxu0 %v471
    %498 = vmatprep.subr.mxu0 0.0
    %499 = vmatpush1.msra.mxu0 %v472
    %500 = vmatprep.subr.mxu0 0.0
    %501 = vmatpush1.msra.mxu0 %v473
    %502 = vmatprep.subr.mxu0 0.0
    %503 = vmatpush1.msra.mxu0 %v474
    %504 = vmatprep.subr.mxu0 0.0
    %505 = vmatpush1.msra.mxu0 %v475
    %506 = vmatprep.subr.mxu0 0.0
    %507 = vmatpush1.msra.mxu0 %v476
    %508 = vmatprep.subr.mxu0 0.0
    %509 = vmatpush1.msra.mxu0 %v477
    %510 = vmatprep.subr.mxu0 0.0
    %511 = vmatpush1.msra.mxu0 0.0
    %512 = vmatprep.subr.mxu0 0.0
    %513 = vmatpush1.msra.mxu0 0.0
    %514 = vmatprep.subr.mxu0 0.0
    %515 = vmatpush1.msra.mxu0 0.0
    %516 = vmatprep.subr.mxu0 0.0
    %517 = vmatpush1.msra.mxu0 0.0
    %518 = vmatprep.subr.mxu0 0.0
    %519 = vmatpush1.msra.mxu0 0.0
    %520 = vmatprep.subr.mxu0 0.0
    %521 = vmatpush1.msra.mxu0 0.0
    %522 = vmatprep.subr.mxu0 0.0
    %523 = vmatpush1.msra.mxu0 0.0
    %524 = vmatprep.subr.mxu0 0.0
    %525 = vmatpush1.msra.mxu0 0.0
    %526 = vmatprep.subr.mxu0 0.0
    %527 = vmatpush1.msra.mxu0 0.0
    %528 = vmatprep.subr.mxu0 0.0
    %529 = vmatpush1.msra.mxu0 0.0
    %530 = vmatprep.subr.mxu0 0.0
    %531 = vmatpush1.msra.mxu0 0.0
    %532 = vmatprep.subr.mxu0 0.0
    %533 = vmatpush1.msra.mxu0 0.0
    %534 = vmatprep.subr.mxu0 0.0
    %535 = vmatpush1.msra.mxu0 0.0
    %536 = vmatprep.subr.mxu0 0.0
    %537 = vmatpush1.msra.mxu0 0.0
    %538 = vmatprep.subr.mxu0 0.0
    %539 = vmatpush1.msra.mxu0 0.0
    %540 = vmatprep.subr.mxu0 0.0
    %541 = vmatpush1.msra.mxu0 0.0
    %542 = vmatprep.mubr.f32.mxu0 0.0
    %543 = vmatmul.mubr.f32.gmra.mrb[0].mxu0 %v62
    %v544 = vpop.f32.mrb[0].mxu0
    %v545 = vadd.f32 0.0, %v544
    %v546 = vpop.f32.mrb[0].mxu0
    %547 = vmatprep.mubr.f32.mxu0 0.0
    %548 = vmatmul.mubr.f32.gmra.mrb[0].mxu0 %v63
    %v549 = vpop.f32.mrb[0].mxu0
    %v550 = vadd.f32 0.0, %v549
    %v551 = vpop.f32.mrb[0].mxu0
    %552 = vmatprep.mubr.f32.mxu0 0.0
    %553 = vmatmul.mubr.f32.gmra.mrb[0].mxu0 %v64
    %v554 = vpop.f32.mrb[0].mxu0
    %v555 = vadd.f32 0.0, %v554
    %v556 = vpop.f32.mrb[0].mxu0
    %557 = vmatprep.mubr.f32.mxu0 0.0
    %558 = vmatmul.mubr.f32.gmra.mrb[0].mxu0 %v65
    %v559 = vpop.f32.mrb[0].mxu0
    %v560 = vadd.f32 0.0, %v559
    %v561 = vpop.f32.mrb[0].mxu0
    %562 = vdwg.mxu0
    %563 = vmatprep.subr.mxu0 0.0
    %564 = vmatpush1.msra.mxu0 %v445
    %565 = vmatprep.subr.mxu0 0.0
    %566 = vmatpush1.msra.mxu0 %v446
    %567 = vmatprep.subr.mxu0 0.0
    %568 = vmatpush1.msra.mxu0 %v447
    %569 = vmatprep.subr.mxu0 0.0
    %570 = vmatpush1.msra.mxu0 %v448
    %571 = vmatprep.subr.mxu0 0.0
    %572 = vmatpush1.msra.mxu0 %v449
    %573 = vmatprep.subr.mxu0 0.0
    %574 = vmatpush1.msra.mxu0 %v450
    %575 = vmatprep.subr.mxu0 0.0
    %576 = vmatpush1.msra.mxu0 %v451
    %577 = vmatprep.subr.mxu0 0.0
    %578 = vmatpush1.msra.mxu0 %v452
    %579 = vmatprep.subr.mxu0 0.0
    %580 = vmatpush1.msra.mxu0 %v453
    %581 = vmatprep.subr.mxu0 0.0
    %582 = vmatpush1.msra.mxu0 %v454
    %583 = vmatprep.subr.mxu0 0.0
    %584 = vmatpush1.msra.mxu0 %v455
    %585 = vmatprep.subr.mxu0 0.0
    %586 = vmatpush1.msra.mxu0 %v456
    %587 = vmatprep.subr.mxu0 0.0
    %588 = vmatpush1.msra.mxu0 %v457
    %589 = vmatprep.subr.mxu0 0.0
    %590 = vmatpush1.msra.mxu0 %v458
    %591 = vmatprep.subr.mxu0 0.0
    %592 = vmatpush1.msra.mxu0 %v459
    %593 = vmatprep.subr.mxu0 0.0
    %594 = vmatpush1.msra.mxu0 %v460
    %595 = vmatprep.subr.mxu0 0.0
    %596 = vmatpush1.msra.mxu0 0.0
    %597 = vmatprep.subr.mxu0 0.0
    %598 = vmatpush1.msra.mxu0 0.0
    %599 = vmatprep.subr.mxu0 0.0
    %600 = vmatpush1.msra.mxu0 0.0
    %601 = vmatprep.subr.mxu0 0.0
    %602 = vmatpush1.msra.mxu0 0.0
    %603 = vmatprep.subr.mxu0 0.0
    %604 = vmatpush1.msra.mxu0 0.0
    %605 = vmatprep.subr.mxu0 0.0
    %606 = vmatpush1.msra.mxu0 0.0
    %607 = vmatprep.subr.mxu0 0.0
    %608 = vmatpush1.msra.mxu0 0.0
    %609 = vmatprep.subr.mxu0 0.0
    %610 = vmatpush1.msra.mxu0 0.0
    %611 = vmatprep.subr.mxu0 0.0
    %612 = vmatpush1.msra.mxu0 0.0
    %613 = vmatprep.subr.mxu0 0.0
    %614 = vmatpush1.msra.mxu0 0.0
    %615 = vmatprep.subr.mxu0 0.0
    %616 = vmatpush1.msra.mxu0 0.0
    %617 = vmatprep.subr.mxu0 0.0
    %618 = vmatpush1.msra.mxu0 0.0
    %619 = vmatprep.subr.mxu0 0.0
    %620 = vmatpush1.msra.mxu0 0.0
    %621 = vmatprep.subr.mxu0 0.0
    %622 = vmatpush1.msra.mxu0 0.0
    %623 = vmatprep.subr.mxu0 0.0
    %624 = vmatpush1.msra.mxu0 0.0
    %625 = vmatprep.subr.mxu0 0.0
    %626 = vmatpush1.msra.mxu0 0.0
    %627 = vmatprep.mubr.f32.mxu0 0.0
    %628 = vmatmul.mubr.f32.gmra.mrb[0].mxu0 %v362
    %v629 = vpop.f32.mrb[0].mxu0
    %v630 = vadd.f32 %v545, %v629
    %v631 = vpop.f32.mrb[0].mxu0
    %632 = vmatprep.mubr.f32.mxu0 0.0
    %633 = vmatmul.mubr.f32.gmra.mrb[0].mxu0 %v367
    %v634 = vpop.f32.mrb[0].mxu0
    %v635 = vadd.f32 %v550, %v634
    %v636 = vpop.f32.mrb[0].mxu0
    %637 = vmatprep.mubr.f32.mxu0 0.0
    %638 = vmatmul.mubr.f32.gmra.mrb[0].mxu0 %v437
    %v639 = vpop.f32.mrb[0].mxu0
    %v640 = vadd.f32 %v555, %v639
    %v641 = vpop.f32.mrb[0].mxu0
    %642 = vmatprep.mubr.f32.mxu0 0.0
    %643 = vmatmul.mubr.f32.gmra.mrb[0].mxu0 %v442
    %v644 = vpop.f32.mrb[0].mxu0
    %v645 = vadd.f32 %v560, %v644
    %v646 = vpop.f32.mrb[0].mxu0
    %647 = vdwg.mxu0
    %v648 = vld [vmem:[%s3] sm:$0x1]
    %v650 = vlaneseq
    %v651 = vshrl.u32 %v650, 7
    %v652 = vsub.s32 0, %v651
    %v653 = vrot.slane %v648, %v652
    %v655 = vadd.f32 %v630, %v653
    %v656 = vadd.f32 %v635, %v653
    %v657 = vadd.f32 %v640, %v653
    %v658 = vadd.f32 %v645, %v653
    %v659 = vtanh.pop %v655
    %v660 = vtanh.pop %v656
    %v661 = vtanh.pop %v657
    %v662 = vtanh.pop %v658
    %663 = vst [vmem:[#allocation8] sm:$0xff] %v659
    %664 = vst [vmem:[#allocation8 + $0x8] sm:$0xff] %v660
    %665 = vst [vmem:[#allocation8 + $0x10] sm:$0xff] %v661
    %666 = vst [vmem:[#allocation8 + $0x18] sm:$0xff] %v662
    // Predicated region
    $region30: #{tpu_custom_call.1} parent=1 // pred_check
      _
    $region31: #{tpu_custom_call.1} parent=1 // pred_check_branch
      %668 = sbr.rel (0) target = $region33
    $region32: #{tpu_custom_call.1} parent=1 // pred_region
      %s670 = ssub.s32 512, 512
      %671 = vsyncadd [#allocation4], %s670
      %s672 = sshll.u32 [#allocation8], 4
      %s673 = int_to_ptr.vmem [resolvable:$true] %s672
      %678 = dma.vmem_to_hbm [thread:$0]  %s673, 512, %s4, [#allocation4], 128, 128, 8
    $region33: #{tpu_custom_call.1} parent=1 // pred_fallthru
      _
    // Predicated region
    $region34: #{tpu_custom_call.1} parent=1 // pred_check
      _
    $region35: #{tpu_custom_call.1} parent=1 // pred_check_branch
      %680 = sbr.rel (0) target = $region37
    $region36: #{tpu_custom_call.1} parent=1 // pred_region
      %s682 = ssub.s32 512, 512
      %683 = vsyncadd [#allocation10], %s682
      %s684 = sshll.u32 [#allocation9], 4
      %s685 = int_to_ptr.vmem [resolvable:$true] %s684
      %690 = dma.vmem_to_hbm [thread:$0]  %s685, 512, %s5, [#allocation10], 128, 128, 8
    $region37: #{tpu_custom_call.1} parent=1 // pred_fallthru
      _
    // Predicated region
    $region38: #{tpu_custom_call.1} parent=1 // pred_check
      _
    $region39: #{tpu_custom_call.1} parent=1 // pred_check_branch
      %692 = sbr.rel (0) target = $region41
    $region40: #{tpu_custom_call.1} parent=1 // pred_region
      %693 = dma.done [#allocation4], 512
    $region41: #{tpu_custom_call.1} parent=1 // pred_fallthru
      _
    // Predicated region
    $region42: #{tpu_custom_call.1} parent=1 // pred_check
      _
    $region43: #{tpu_custom_call.1} parent=1 // pred_check_branch
      %695 = sbr.rel (0) target = $region45
    $region44: #{tpu_custom_call.1} parent=1 // pred_region
      %696 = dma.done [#allocation10], 512
    $region45: #{tpu_custom_call.1} parent=1 // pred_fallthru
      _
    %697 = vsyncpa [#allocation3], 1
    %698 = vsyncpa [#allocation6], 1
    %699 = vsyncpa [#allocation4], 1
    %700 = vsyncpa [#allocation10], 1

// kernel: tpu_custom_call.1
$region0: #{tpu_custom_call.1}
  #allocation0 [shape = 'u32[]', space=smem, size = 0x4, offset = 0x4, fixed_abs, tag = 'smem constant byte address 0x4 - core index']
  #allocation1 [shape = 'u32[144,128]{1,0:T(1,128)}', space=vmem, size = 0x12000, scoped, tag = 'internal scratch']
  %s0 = inlined_call_operand.hbm [shape: f32[2,16,128], index: 0, kind: input, shape index: {}]
  %s1 = inlined_call_operand.hbm [shape: f32[2,128,128], index: 1, kind: input, shape index: {}]
  %s2 = inlined_call_operand.hbm [shape: f32[2,128,128], index: 2, kind: input, shape index: {}]
  %s3 = inlined_call_operand.vmem [shape: f32[1,128], index: 3, kind: input, shape index: {}]
  %s4 = inlined_call_operand.hbm [shape: f32[2,16,128], index: 4, kind: output, shape index: {0}]
  %s5 = inlined_call_operand.hbm [shape: f32[2,16,128], index: 5, kind: output, shape index: {1}]
  %6 = xla_tuple %s4, %s5
  %s7 = sld [smem:[#allocation0]]
  $region46: #{tpu_custom_call.1} parent=0
    _
  %s9 = ssub.s32 1, %s7
  %s10 = scalar_select 0, %s9, %s7
  $region1: #{tpu_custom_call.1} parent=0
    #allocation2 [shape = 'u8[16384]{0}', space=vmem, size = 0x4000, scoped, tag = 'input window, operand 0, single buffered']
    #allocation3 [shape = 's32[1]{0}', space=sflag, size = 0x4, scoped, tag = 'scoped memory for tpu_custom_call.1']
    #allocation4 [shape = 's32[1]{0}', space=sflag, size = 0x4, scoped, tag = 'scoped memory for tpu_custom_call.1']
    #allocation5 [shape = 'u8[131072]{0}', space=vmem, size = 0x20000, scoped, tag = 'input window, operand 1, single buffered']
    #allocation6 [shape = 's32[1]{0}', space=sflag, size = 0x4, scoped, tag = 'scoped memory for tpu_custom_call.1']
    #allocation7 [shape = 'u8[131072]{0}', space=vmem, size = 0x20000, scoped, tag = 'input window, operand 2, single buffered']
    #allocation8 [shape = 'u8[16384]{0}', space=vmem, size = 0x4000, scoped, tag = 'output window, operand 0, single buffered']
    #allocation9 [shape = 'u8[16384]{0}', space=vmem, size = 0x4000, scoped, tag = 'output window, operand 1, single buffered']
    #allocation10 [shape = 's32[1]{0}', space=sflag, size = 0x4, scoped, tag = 'scoped memory for tpu_custom_call.1']
    %11 = vsyncpa [#allocation3], 0
    %12 = vsyncpa [#allocation6], 0
    %13 = vsyncpa [#allocation4], 0
    %14 = vsyncpa [#allocation10], 0
    // Predicated region
    $region2: #{tpu_custom_call.1} parent=1 // pred_check
      _
    $region3: #{tpu_custom_call.1} parent=1 // pred_check_branch
      %16 = sbr.rel (0) target = $region5
    $region4: #{tpu_custom_call.1} parent=1 // pred_region
      %s18 = ssub.s32 512, 512
      %19 = vsyncadd [#allocation3], %s18
      %s20 = sshll.u32 [#allocation2], 4
      %s21 = int_to_ptr.vmem [resolvable:$true] %s20
      %26 = dma.hbm_to_vmem [thread:$0]  %s0, 512, %s21, [#allocation3], 128, 128, 8
    $region5: #{tpu_custom_call.1} parent=1 // pred_fallthru
      _
    // Predicated region
    $region6: #{tpu_custom_call.1} parent=1 // pred_check
      _
    $region7: #{tpu_custom_call.1} parent=1 // pred_check_branch
      %28 = sbr.rel (0) target = $region9
    $region8: #{tpu_custom_call.1} parent=1 // pred_region
      %s30 = ssub.s32 4096, 4096
      %31 = vsyncadd [#allocation6], %s30
      %s32 = sshll.u32 [#allocation5], 4
      %s33 = int_to_ptr.vmem [resolvable:$true] %s32
      %38 = dma.hbm_to_vmem [thread:$0]  %s1, 4096, %s33, [#allocation6], 128, 128, 8
    $region9: #{tpu_custom_call.1} parent=1 // pred_fallthru
      _
    // Predicated region
    $region10: #{tpu_custom_call.1} parent=1 // pred_check
      _
    $region11: #{tpu_custom_call.1} parent=1 // pred_check_branch
      %40 = sbr.rel (0) target = $region13
    $region12: #{tpu_custom_call.1} parent=1 // pred_region
      %s42 = ssub.s32 4096, 4096
      %43 = vsyncadd [#allocation6], %s42
      %s44 = sshll.u32 [#allocation7], 4
      %s45 = int_to_ptr.vmem [resolvable:$true] %s44
      %50 = dma.hbm_to_vmem [thread:$0]  %s2, 4096, %s45, [#allocation6], 128, 128, 8
    $region13: #{tpu_custom_call.1} parent=1 // pred_fallthru
      _
    // Predicated region
    $region14: #{tpu_custom_call.1} parent=1 // pred_check
      _
    $region15: #{tpu_custom_call.1} parent=1 // pred_check_branch
      %52 = sbr.rel (0) target = $region17
    $region16: #{tpu_custom_call.1} parent=1 // pred_region
      _
    $region17: #{tpu_custom_call.1} parent=1 // pred_fallthru
      _
    // Predicated region
    $region18: #{tpu_custom_call.1} parent=1 // pred_check
      _
    $region19: #{tpu_custom_call.1} parent=1 // pred_check_branch
      %54 = sbr.rel (0) target = $region21
    $region20: #{tpu_custom_call.1} parent=1 // pred_region
      %55 = dma.done [#allocation3], 512
    $region21: #{tpu_custom_call.1} parent=1 // pred_fallthru
      _
    // Predicated region
    $region22: #{tpu_custom_call.1} parent=1 // pred_check
      _
    $region23: #{tpu_custom_call.1} parent=1 // pred_check_branch
      %57 = sbr.rel (0) target = $region25
    $region24: #{tpu_custom_call.1} parent=1 // pred_region
      %58 = dma.done [#allocation6], 4096
    $region25: #{tpu_custom_call.1} parent=1 // pred_fallthru
      _
    // Predicated region
    $region26: #{tpu_custom_call.1} parent=1 // pred_check
      _
    $region27: #{tpu_custom_call.1} parent=1 // pred_check_branch
      %60 = sbr.rel (0) target = $region29
    $region28: #{tpu_custom_call.1} parent=1 // pred_region
      %61 = dma.done [#allocation6], 4096
    $region29: #{tpu_custom_call.1} parent=1 // pred_fallthru
      _
    %v62 = vld [vmem:[#allocation2] sm:$0xff]
    %v63 = vld [vmem:[#allocation2 + $0x8] sm:$0xff]
    %v64 = vld [vmem:[#allocation2 + $0x10] sm:$0xff]
    %v65 = vld [vmem:[#allocation2 + $0x18] sm:$0xff]
    %v66 = vld [vmem:[#allocation5] sm:$0xff]
    %v67 = vld [vmem:[#allocation5 + $0x8] sm:$0xff]
    %v68 = vld [vmem:[#allocation5 + $0x10] sm:$0xff]
    %v69 = vld [vmem:[#allocation5 + $0x18] sm:$0xff]
    %v70 = vld [vmem:[#allocation5 + $0x20] sm:$0xff]
    %v71 = vld [vmem:[#allocation5 + $0x28] sm:$0xff]
    %v72 = vld [vmem:[#allocation5 + $0x30] sm:$0xff]
    %v73 = vld [vmem:[#allocation5 + $0x38] sm:$0xff]
    %v74 = vld [vmem:[#allocation5 + $0x40] sm:$0xff]
    %v75 = vld [vmem:[#allocation5 + $0x48] sm:$0xff]
    %v76 = vld [vmem:[#allocation5 + $0x50] sm:$0xff]
    %v77 = vld [vmem:[#allocation5 + $0x58] sm:$0xff]
    %v78 = vld [vmem:[#allocation5 + $0x60] sm:$0xff]
    %v79 = vld [vmem:[#allocation5 + $0x68] sm:$0xff]
    %v80 = vld [vmem:[#allocation5 + $0x70] sm:$0xff]
    %v81 = vld [vmem:[#allocation5 + $0x78] sm:$0xff]
    %v82 = vld [vmem:[#allocation5 + $0x80] sm:$0xff]
    %v83 = vld [vmem:[#allocation5 + $0x88] sm:$0xff]
    %v84 = vld [vmem:[#allocation5 + $0x90] sm:$0xff]
    %v85 = vld [vmem:[#allocation5 + $0x98] sm:$0xff]
    %v86 = vld [vmem:[#allocation5 + $0xa0] sm:$0xff]
    %v87 = vld [vmem:[#allocation5 + $0xa8] sm:$0xff]
    %v88 = vld [vmem:[#allocation5 + $0xb0] sm:$0xff]
    %v89 = vld [vmem:[#allocation5 + $0xb8] sm:$0xff]
    %v90 = vld [vmem:[#allocation5 + $0xc0] sm:$0xff]
    %v91 = vld [vmem:[#allocation5 + $0xc8] sm:$0xff]
    %v92 = vld [vmem:[#allocation5 + $0xd0] sm:$0xff]
    %v93 = vld [vmem:[#allocation5 + $0xd8] sm:$0xff]
    %v94 = vld [vmem:[#allocation5 + $0xe0] sm:$0xff]
    %v95 = vld [vmem:[#allocation5 + $0xe8] sm:$0xff]
    %v96 = vld [vmem:[#allocation5 + $0xf0] sm:$0xff]
    %v97 = vld [vmem:[#allocation5 + $0xf8] sm:$0xff]
    %98 = vmatprep.subr.mxu0 0.0
    %99 = vmatpush1.xpose.msra.mxu0 %v66
    %100 = vmatprep.subr.mxu0 0.0
    %101 = vmatpush1.xpose.msra.mxu0 %v67
    %102 = vmatprep.subr.mxu0 0.0
    %103 = vmatpush1.xpose.msra.mxu0 %v68
    %104 = vmatprep.subr.mxu0 0.0
    %105 = vmatpush1.xpose.msra.mxu0 %v69
    %106 = vmatprep.subr.mxu0 0.0
    %107 = vmatpush1.xpose.msra.mxu0 %v70
    %108 = vmatprep.subr.mxu0 0.0
    %109 = vmatpush1.xpose.msra.mxu0 %v71
    %110 = vmatprep.subr.mxu0 0.0
    %111 = vmatpush1.xpose.msra.mxu0 %v72
    %112 = vmatprep.subr.mxu0 0.0
    %113 = vmatpush1.xpose.msra.mxu0 %v73
    %114 = vmatprep.subr.mxu0 0.0
    %115 = vmatpush1.xpose.msra.mxu0 %v74
    %116 = vmatprep.subr.mxu0 0.0
    %117 = vmatpush1.xpose.msra.mxu0 %v75
    %118 = vmatprep.subr.mxu0 0.0
    %119 = vmatpush1.xpose.msra.mxu0 %v76
    %120 = vmatprep.subr.mxu0 0.0
    %121 = vmatpush1.xpose.msra.mxu0 %v77
    %122 = vmatprep.subr.mxu0 0.0
    %123 = vmatpush1.xpose.msra.mxu0 %v78
    %124 = vmatprep.subr.mxu0 0.0
    %125 = vmatpush1.xpose.msra.mxu0 %v79
    %126 = vmatprep.subr.mxu0 0.0
    %127 = vmatpush1.xpose.msra.mxu0 %v80
    %128 = vmatprep.subr.mxu0 0.0
    %129 = vmatpush1.xpose.msra.mxu0 %v81
    %130 = vmatprep.subr.mxu0 0.0
    %131 = vmatpush1.xpose.msra.mxu0 0.0
    %132 = vmatprep.subr.mxu0 0.0
    %133 = vmatpush1.xpose.msra.mxu0 0.0
    %134 = vmatprep.subr.mxu0 0.0
    %135 = vmatpush1.xpose.msra.mxu0 0.0
    %136 = vmatprep.subr.mxu0 0.0
    %137 = vmatpush1.xpose.msra.mxu0 0.0
    %138 = vmatprep.subr.mxu0 0.0
    %139 = vmatpush1.xpose.msra.mxu0 0.0
    %140 = vmatprep.subr.mxu0 0.0
    %141 = vmatpush1.xpose.msra.mxu0 0.0
    %142 = vmatprep.subr.mxu0 0.0
    %143 = vmatpush1.xpose.msra.mxu0 0.0
    %144 = vmatprep.subr.mxu0 0.0
    %145 = vmatpush1.xpose.msra.mxu0 0.0
    %146 = vmatprep.subr.mxu0 0.0
    %147 = vmatpush1.xpose.msra.mxu0 0.0
    %148 = vmatprep.subr.mxu0 0.0
    %149 = vmatpush1.xpose.msra.mxu0 0.0
    %150 = vmatprep.subr.mxu0 0.0
    %151 = vmatpush1.xpose.msra.mxu0 0.0
    %152 = vmatprep.subr.mxu0 0.0
    %153 = vmatpush1.xpose.msra.mxu0 0.0
    %154 = vmatprep.subr.mxu0 0.0
    %155 = vmatpush1.xpose.msra.mxu0 0.0
    %156 = vmatprep.subr.mxu0 0.0
    %157 = vmatpush1.xpose.msra.mxu0 0.0
    %158 = vmatprep.subr.mxu0 0.0
    %159 = vmatpush1.xpose.msra.mxu0 0.0
    %160 = vmatprep.subr.mxu0 0.0
    %161 = vmatpush1.xpose.msra.mxu0 0.0
    %162 = vmatprep.mubr.f32.mxu0 0.0
    %163 = vmatmul.mubr.f32.gmra.mrb[0].mxu0 %v62
    %v164 = vpop.f32.mrb[0].mxu0
    %v165 = vadd.f32 0.0, %v164
    %v166 = vpop.f32.mrb[0].mxu0
    %167 = vmatprep.mubr.f32.mxu0 0.0
    %168 = vmatmul.mubr.f32.gmra.mrb[0].mxu0 %v63
    %v169 = vpop.f32.mrb[0].mxu0
    %v170 = vadd.f32 0.0, %v169
    %v171 = vpop.f32.mrb[0].mxu0
    %172 = vdwg.mxu0
    %173 = vmatprep.subr.mxu0 0.0
    %174 = vmatpush1.xpose.msra.mxu0 %v82
    %175 = vmatprep.subr.mxu0 0.0
    %176 = vmatpush1.xpose.msra.mxu0 %v83
    %177 = vmatprep.subr.mxu0 0.0
    %178 = vmatpush1.xpose.msra.mxu0 %v84
    %179 = vmatprep.subr.mxu0 0.0
    %180 = vmatpush1.xpose.msra.mxu0 %v85
    %181 = vmatprep.subr.mxu0 0.0
    %182 = vmatpush1.xpose.msra.mxu0 %v86
    %183 = vmatprep.subr.mxu0 0.0
    %184 = vmatpush1.xpose.msra.mxu0 %v87
    %185 = vmatprep.subr.mxu0 0.0
    %186 = vmatpush1.xpose.msra.mxu0 %v88
    %187 = vmatprep.subr.mxu0 0.0
    %188 = vmatpush1.xpose.msra.mxu0 %v89
    %189 = vmatprep.subr.mxu0 0.0
    %190 = vmatpush1.xpose.msra.mxu0 %v90
    %191 = vmatprep.subr.mxu0 0.0
    %192 = vmatpush1.xpose.msra.mxu0 %v91
    %193 = vmatprep.subr.mxu0 0.0
    %194 = vmatpush1.xpose.msra.mxu0 %v92
    %195 = vmatprep.subr.mxu0 0.0
    %196 = vmatpush1.xpose.msra.mxu0 %v93
    %197 = vmatprep.subr.mxu0 0.0
    %198 = vmatpush1.xpose.msra.mxu0 %v94
    %199 = vmatprep.subr.mxu0 0.0
    %200 = vmatpush1.xpose.msra.mxu0 %v95
    %201 = vmatprep.subr.mxu0 0.0
    %202 = vmatpush1.xpose.msra.mxu0 %v96
    %203 = vmatprep.subr.mxu0 0.0
    %204 = vmatpush1.xpose.msra.mxu0 %v97
    %205 = vmatprep.subr.mxu0 0.0
    %206 = vmatpush1.xpose.msra.mxu0 0.0
    %207 = vmatprep.subr.mxu0 0.0
    %208 = vmatpush1.xpose.msra.mxu0 0.0
    %209 = vmatprep.subr.mxu0 0.0
    %210 = vmatpush1.xpose.msra.mxu0 0.0
    %211 = vmatprep.subr.mxu0 0.0
    %212 = vmatpush1.xpose.msra.mxu0 0.0
    %213 = vmatprep.subr.mxu0 0.0
    %214 = vmatpush1.xpose.msra.mxu0 0.0
    %215 = vmatprep.subr.mxu0 0.0
    %216 = vmatpush1.xpose.msra.mxu0 0.0
    %217 = vmatprep.subr.mxu0 0.0
    %218 = vmatpush1.xpose.msra.mxu0 0.0
    %219 = vmatprep.subr.mxu0 0.0
    %220 = vmatpush1.xpose.msra.mxu0 0.0
    %221 = vmatprep.subr.mxu0 0.0
    %222 = vmatpush1.xpose.msra.mxu0 0.0
    %223 = vmatprep.subr.mxu0 0.0
    %224 = vmatpush1.xpose.msra.mxu0 0.0
    %225 = vmatprep.subr.mxu0 0.0
    %226 = vmatpush1.xpose.msra.mxu0 0.0
    %227 = vmatprep.subr.mxu0 0.0
    %228 = vmatpush1.xpose.msra.mxu0 0.0
    %229 = vmatprep.subr.mxu0 0.0
    %230 = vmatpush1.xpose.msra.mxu0 0.0
    %231 = vmatprep.subr.mxu0 0.0
    %232 = vmatpush1.xpose.msra.mxu0 0.0
    %233 = vmatprep.subr.mxu0 0.0
    %234 = vmatpush1.xpose.msra.mxu0 0.0
    %235 = vmatprep.subr.mxu0 0.0
    %236 = vmatpush1.xpose.msra.mxu0 0.0
    %237 = vmatprep.mubr.f32.mxu0 0.0
    %238 = vmatmul.mubr.f32.gmra.mrb[0].mxu0 %v64
    %v239 = vpop.f32.mrb[0].mxu0
    %v240 = vadd.f32 0.0, %v239
    %v241 = vpop.f32.mrb[0].mxu0
    %242 = vmatprep.mubr.f32.mxu0 0.0
    %243 = vmatmul.mubr.f32.gmra.mrb[0].mxu0 %v65
    %v244 = vpop.f32.mrb[0].mxu0
    %v245 = vadd.f32 0.0, %v244
    %v246 = vpop.f32.mrb[0].mxu0
    %247 = vdwg.mxu0
    %v248 = vlaneseq
    %v249 = vand.u32 %v248, 127
    %vm250 = vcmp.lt.s32.totalorder %v249, 8
    %v251 = vsel %vm250, %v165, -1e+30
    %v252 = vsel %vm250, %v170, -1e+30
    %v253 = vsel %vm250, %v240, -1e+30
    %v254 = vsel %vm250, %v245, -1e+30
    %255 = vmax.xlane.f32.xlu0 %v251
    %v256 = vpop.xlane.xlu0 %255
    %257 = vmax.xlane.f32.xlu0 %v252
    %v258 = vpop.xlane.xlu0 %257
    %259 = vmax.xlane.f32.xlu0 %v253
    %v260 = vpop.xlane.xlu0 %259
    %261 = vmax.xlane.f32.xlu0 %v254
    %v262 = vpop.xlane.xlu0 %261
    %v263 = vsub.f32 %v251, %v256
    %v264 = vsub.f32 %v252, %v258
    %v265 = vsub.f32 %v253, %v260
    %v266 = vsub.f32 %v254, %v262
    %v267 = vmul.f32 %v263, 1.442695
    %v268 = vpow.pop %v267
    %v269 = vmul.f32 %v264, 1.442695
    %v270 = vpow.pop %v269
    %v271 = vmul.f32 %v265, 1.442695
    %v272 = vpow.pop %v271
    %v273 = vmul.f32 %v266, 1.442695
    %v274 = vpow.pop %v273
    %275 = vadd.xlane.f32.xlu0 %v268
    %v276 = vpop.xlane.xlu0 %275
    %277 = vadd.xlane.f32.xlu0 %v270
    %v278 = vpop.xlane.xlu0 %277
    %279 = vadd.xlane.f32.xlu0 %v272
    %v280 = vpop.xlane.xlu0 %279
    %281 = vadd.xlane.f32.xlu0 %v274
    %v282 = vpop.xlane.xlu0 %281
    %v283 = vrcp.pop %v276
    %v284 = vrcp.pop %v278
    %v285 = vrcp.pop %v280
    %v286 = vrcp.pop %v282
    %v287 = vmul.f32 %v268, %v283
    %v288 = vmul.f32 %v270, %v284
    %v289 = vmul.f32 %v272, %v285
    %v290 = vmul.f32 %v274, %v286
    %291 = vst [vmem:[#allocation9] sm:$0xff] %v287
    %292 = vst [vmem:[#allocation9 + $0x8] sm:$0xff] %v288
    %293 = vst [vmem:[#allocation9 + $0x10] sm:$0xff] %v289
    %294 = vst [vmem:[#allocation9 + $0x18] sm:$0xff] %v290
    %295 = vmatprep.subr.mxu0 0.0
    %296 = vmatpush1.msra.mxu0 %v66
    %297 = vmatprep.subr.mxu0 0.0
    %298 = vmatpush1.msra.mxu0 %v67
    %299 = vmatprep.subr.mxu0 0.0
    %300 = vmatpush1.msra.mxu0 %v68
    %301 = vmatprep.subr.mxu0 0.0
    %302 = vmatpush1.msra.mxu0 %v69
    %303 = vmatprep.subr.mxu0 0.0
    %304 = vmatpush1.msra.mxu0 %v70
    %305 = vmatprep.subr.mxu0 0.0
    %306 = vmatpush1.msra.mxu0 %v71
    %307 = vmatprep.subr.mxu0 0.0
    %308 = vmatpush1.msra.mxu0 %v72
    %309 = vmatprep.subr.mxu0 0.0
    %310 = vmatpush1.msra.mxu0 %v73
    %311 = vmatprep.subr.mxu0 0.0
    %312 = vmatpush1.msra.mxu0 %v74
    %313 = vmatprep.subr.mxu0 0.0
    %314 = vmatpush1.msra.mxu0 %v75
    %315 = vmatprep.subr.mxu0 0.0
    %316 = vmatpush1.msra.mxu0 %v76
    %317 = vmatprep.subr.mxu0 0.0
    %318 = vmatpush1.msra.mxu0 %v77
    %319 = vmatprep.subr.mxu0 0.0
    %320 = vmatpush1.msra.mxu0 %v78
    %321 = vmatprep.subr.mxu0 0.0
    %322 = vmatpush1.msra.mxu0 %v79
    %323 = vmatprep.subr.mxu0 0.0
    %324 = vmatpush1.msra.mxu0 %v80
    %325 = vmatprep.subr.mxu0 0.0
    %326 = vmatpush1.msra.mxu0 %v81
    %327 = vmatprep.subr.mxu0 0.0
    %328 = vmatpush1.msra.mxu0 0.0
    %329 = vmatprep.subr.mxu0 0.0
    %330 = vmatpush1.msra.mxu0 0.0
    %331 = vmatprep.subr.mxu0 0.0
    %332 = vmatpush1.msra.mxu0 0.0
    %333 = vmatprep.subr.mxu0 0.0
    %334 = vmatpush1.msra.mxu0 0.0
    %335 = vmatprep.subr.mxu0 0.0
    %336 = vmatpush1.msra.mxu0 0.0
    %337 = vmatprep.subr.mxu0 0.0
    %338 = vmatpush1.msra.mxu0 0.0
    %339 = vmatprep.subr.mxu0 0.0
    %340 = vmatpush1.msra.mxu0 0.0
    %341 = vmatprep.subr.mxu0 0.0
    %342 = vmatpush1.msra.mxu0 0.0
    %343 = vmatprep.subr.mxu0 0.0
    %344 = vmatpush1.msra.mxu0 0.0
    %345 = vmatprep.subr.mxu0 0.0
    %346 = vmatpush1.msra.mxu0 0.0
    %347 = vmatprep.subr.mxu0 0.0
    %348 = vmatpush1.msra.mxu0 0.0
    %349 = vmatprep.subr.mxu0 0.0
    %350 = vmatpush1.msra.mxu0 0.0
    %351 = vmatprep.subr.mxu0 0.0
    %352 = vmatpush1.msra.mxu0 0.0
    %353 = vmatprep.subr.mxu0 0.0
    %354 = vmatpush1.msra.mxu0 0.0
    %355 = vmatprep.subr.mxu0 0.0
    %356 = vmatpush1.msra.mxu0 0.0
    %357 = vmatprep.subr.mxu0 0.0
    %358 = vmatpush1.msra.mxu0 0.0
    %359 = vmatprep.mubr.f32.mxu0 0.0
    %360 = vmatmul.mubr.f32.gmra.mrb[0].mxu0 %v287
    %v361 = vpop.f32.mrb[0].mxu0
    %v362 = vadd.f32 0.0, %v361
    %v363 = vpop.f32.mrb[0].mxu0
    %364 = vmatprep.mubr.f32.mxu0 0.0
    %365 = vmatmul.mubr.f32.gmra.mrb[0].mxu0 %v288
    %v366 = vpop.f32.mrb[0].mxu0
    %v367 = vadd.f32 0.0, %v366
    %v368 = vpop.f32.mrb[0].mxu0
    %369 = vdwg.mxu0
    %370 = vmatprep.subr.mxu0 0.0
    %371 = vmatpush1.msra.mxu0 %v82
    %372 = vmatprep.subr.mxu0 0.0
    %373 = vmatpush1.msra.mxu0 %v83
    %374 = vmatprep.subr.mxu0 0.0
    %375 = vmatpush1.msra.mxu0 %v84
    %376 = vmatprep.subr.mxu0 0.0
    %377 = vmatpush1.msra.mxu0 %v85
    %378 = vmatprep.subr.mxu0 0.0
    %379 = vmatpush1.msra.mxu0 %v86
    %380 = vmatprep.subr.mxu0 0.0
    %381 = vmatpush1.msra.mxu0 %v87
    %382 = vmatprep.subr.mxu0 0.0
    %383 = vmatpush1.msra.mxu0 %v88
    %384 = vmatprep.subr.mxu0 0.0
    %385 = vmatpush1.msra.mxu0 %v89
    %386 = vmatprep.subr.mxu0 0.0
    %387 = vmatpush1.msra.mxu0 %v90
    %388 = vmatprep.subr.mxu0 0.0
    %389 = vmatpush1.msra.mxu0 %v91
    %390 = vmatprep.subr.mxu0 0.0
    %391 = vmatpush1.msra.mxu0 %v92
    %392 = vmatprep.subr.mxu0 0.0
    %393 = vmatpush1.msra.mxu0 %v93
    %394 = vmatprep.subr.mxu0 0.0
    %395 = vmatpush1.msra.mxu0 %v94
    %396 = vmatprep.subr.mxu0 0.0
    %397 = vmatpush1.msra.mxu0 %v95
    %398 = vmatprep.subr.mxu0 0.0
    %399 = vmatpush1.msra.mxu0 %v96
    %400 = vmatprep.subr.mxu0 0.0
    %401 = vmatpush1.msra.mxu0 %v97
    %402 = vmatprep.subr.mxu0 0.0
    %403 = vmatpush1.msra.mxu0 0.0
    %404 = vmatprep.subr.mxu0 0.0
    %405 = vmatpush1.msra.mxu0 0.0
    %406 = vmatprep.subr.mxu0 0.0
    %407 = vmatpush1.msra.mxu0 0.0
    %408 = vmatprep.subr.mxu0 0.0
    %409 = vmatpush1.msra.mxu0 0.0
    %410 = vmatprep.subr.mxu0 0.0
    %411 = vmatpush1.msra.mxu0 0.0
    %412 = vmatprep.subr.mxu0 0.0
    %413 = vmatpush1.msra.mxu0 0.0
    %414 = vmatprep.subr.mxu0 0.0
    %415 = vmatpush1.msra.mxu0 0.0
    %416 = vmatprep.subr.mxu0 0.0
    %417 = vmatpush1.msra.mxu0 0.0
    %418 = vmatprep.subr.mxu0 0.0
    %419 = vmatpush1.msra.mxu0 0.0
    %420 = vmatprep.subr.mxu0 0.0
    %421 = vmatpush1.msra.mxu0 0.0
    %422 = vmatprep.subr.mxu0 0.0
    %423 = vmatpush1.msra.mxu0 0.0
    %424 = vmatprep.subr.mxu0 0.0
    %425 = vmatpush1.msra.mxu0 0.0
    %426 = vmatprep.subr.mxu0 0.0
    %427 = vmatpush1.msra.mxu0 0.0
    %428 = vmatprep.subr.mxu0 0.0
    %429 = vmatpush1.msra.mxu0 0.0
    %430 = vmatprep.subr.mxu0 0.0
    %431 = vmatpush1.msra.mxu0 0.0
    %432 = vmatprep.subr.mxu0 0.0
    %433 = vmatpush1.msra.mxu0 0.0
    %434 = vmatprep.mubr.f32.mxu0 0.0
    %435 = vmatmul.mubr.f32.gmra.mrb[0].mxu0 %v289
    %v436 = vpop.f32.mrb[0].mxu0
    %v437 = vadd.f32 0.0, %v436
    %v438 = vpop.f32.mrb[0].mxu0
    %439 = vmatprep.mubr.f32.mxu0 0.0
    %440 = vmatmul.mubr.f32.gmra.mrb[0].mxu0 %v290
    %v441 = vpop.f32.mrb[0].mxu0
    %v442 = vadd.f32 0.0, %v441
    %v443 = vpop.f32.mrb[0].mxu0
    %444 = vdwg.mxu0
    %v445 = vld [vmem:[#allocation7] sm:$0xff]
    %v446 = vld [vmem:[#allocation7 + $0x8] sm:$0xff]
    %v447 = vld [vmem:[#allocation7 + $0x10] sm:$0xff]
    %v448 = vld [vmem:[#allocation7 + $0x18] sm:$0xff]
    %v449 = vld [vmem:[#allocation7 + $0x20] sm:$0xff]
    %v450 = vld [vmem:[#allocation7 + $0x28] sm:$0xff]
    %v451 = vld [vmem:[#allocation7 + $0x30] sm:$0xff]
    %v452 = vld [vmem:[#allocation7 + $0x38] sm:$0xff]
    %v453 = vld [vmem:[#allocation7 + $0x40] sm:$0xff]
    %v454 = vld [vmem:[#allocation7 + $0x48] sm:$0xff]
    %v455 = vld [vmem:[#allocation7 + $0x50] sm:$0xff]
    %v456 = vld [vmem:[#allocation7 + $0x58] sm:$0xff]
    %v457 = vld [vmem:[#allocation7 + $0x60] sm:$0xff]
    %v458 = vld [vmem:[#allocation7 + $0x68] sm:$0xff]
    %v459 = vld [vmem:[#allocation7 + $0x70] sm:$0xff]
    %v460 = vld [vmem:[#allocation7 + $0x78] sm:$0xff]
    %s461 = scalar_lea.vmem [#allocation7], 128
    %v462 = vld [vmem:[%s461] sm:$0xff]
    %v463 = vld [vmem:[%s461 + $0x8] sm:$0xff]
    %v464 = vld [vmem:[%s461 + $0x10] sm:$0xff]
    %v465 = vld [vmem:[%s461 + $0x18] sm:$0xff]
    %v466 = vld [vmem:[%s461 + $0x20] sm:$0xff]
    %v467 = vld [vmem:[%s461 + $0x28] sm:$0xff]
    %v468 = vld [vmem:[%s461 + $0x30] sm:$0xff]
    %v469 = vld [vmem:[%s461 + $0x38] sm:$0xff]
    %v470 = vld [vmem:[%s461 + $0x40] sm:$0xff]
    %v471 = vld [vmem:[%s461 + $0x48] sm:$0xff]
    %v472 = vld [vmem:[%s461 + $0x50] sm:$0xff]
    %v473 = vld [vmem:[%s461 + $0x58] sm:$0xff]
    %v474 = vld [vmem:[%s461 + $0x60] sm:$0xff]
    %v475 = vld [vmem:[%s461 + $0x68] sm:$0xff]
    %v476 = vld [vmem:[%s461 + $0x70] sm:$0xff]
    %v477 = vld [vmem:[%s461 + $0x78] sm:$0xff]
    %478 = vmatprep.subr.mxu0 0.0
    %479 = vmatpush1.msra.mxu0 %v462
    %480 = vmatprep.subr.mxu0 0.0
    %481 = vmatpush1.msra.mxu0 %v463
    %482 = vmatprep.subr.mxu0 0.0
    %483 = vmatpush1.msra.mxu0 %v464
    %484 = vmatprep.subr.mxu0 0.0
    %485 = vmatpush1.msra.mxu0 %v465
    %486 = vmatprep.subr.mxu0 0.0
    %487 = vmatpush1.msra.mxu0 %v466
    %488 = vmatprep.subr.mxu0 0.0
    %489 = vmatpush1.msra.mxu0 %v467
    %490 = vmatprep.subr.mxu0 0.0
    %491 = vmatpush1.msra.mxu0 %v468
    %492 = vmatprep.subr.mxu0 0.0
    %493 = vmatpush1.msra.mxu0 %v469
    %494 = vmatprep.subr.mxu0 0.0
    %495 = vmatpush1.msra.mxu0 %v470
    %496 = vmatprep.subr.mxu0 0.0
    %497 = vmatpush1.msra.mxu0 %v471
    %498 = vmatprep.subr.mxu0 0.0
    %499 = vmatpush1.msra.mxu0 %v472
    %500 = vmatprep.subr.mxu0 0.0
    %501 = vmatpush1.msra.mxu0 %v473
    %502 = vmatprep.subr.mxu0 0.0
    %503 = vmatpush1.msra.mxu0 %v474
    %504 = vmatprep.subr.mxu0 0.0
    %505 = vmatpush1.msra.mxu0 %v475
    %506 = vmatprep.subr.mxu0 0.0
    %507 = vmatpush1.msra.mxu0 %v476
    %508 = vmatprep.subr.mxu0 0.0
    %509 = vmatpush1.msra.mxu0 %v477
    %510 = vmatprep.subr.mxu0 0.0
    %511 = vmatpush1.msra.mxu0 0.0
    %512 = vmatprep.subr.mxu0 0.0
    %513 = vmatpush1.msra.mxu0 0.0
    %514 = vmatprep.subr.mxu0 0.0
    %515 = vmatpush1.msra.mxu0 0.0
    %516 = vmatprep.subr.mxu0 0.0
    %517 = vmatpush1.msra.mxu0 0.0
    %518 = vmatprep.subr.mxu0 0.0
    %519 = vmatpush1.msra.mxu0 0.0
    %520 = vmatprep.subr.mxu0 0.0
    %521 = vmatpush1.msra.mxu0 0.0
    %522 = vmatprep.subr.mxu0 0.0
    %523 = vmatpush1.msra.mxu0 0.0
    %524 = vmatprep.subr.mxu0 0.0
    %525 = vmatpush1.msra.mxu0 0.0
    %526 = vmatprep.subr.mxu0 0.0
    %527 = vmatpush1.msra.mxu0 0.0
    %528 = vmatprep.subr.mxu0 0.0
    %529 = vmatpush1.msra.mxu0 0.0
    %530 = vmatprep.subr.mxu0 0.0
    %531 = vmatpush1.msra.mxu0 0.0
    %532 = vmatprep.subr.mxu0 0.0
    %533 = vmatpush1.msra.mxu0 0.0
    %534 = vmatprep.subr.mxu0 0.0
    %535 = vmatpush1.msra.mxu0 0.0
    %536 = vmatprep.subr.mxu0 0.0
    %537 = vmatpush1.msra.mxu0 0.0
    %538 = vmatprep.subr.mxu0 0.0
    %539 = vmatpush1.msra.mxu0 0.0
    %540 = vmatprep.subr.mxu0 0.0
    %541 = vmatpush1.msra.mxu0 0.0
    %542 = vmatprep.mubr.f32.mxu0 0.0
    %543 = vmatmul.mubr.f32.gmra.mrb[0].mxu0 %v62
    %v544 = vpop.f32.mrb[0].mxu0
    %v545 = vadd.f32 0.0, %v544
    %v546 = vpop.f32.mrb[0].mxu0
    %547 = vmatprep.mubr.f32.mxu0 0.0
    %548 = vmatmul.mubr.f32.gmra.mrb[0].mxu0 %v63
    %v549 = vpop.f32.mrb[0].mxu0
    %v550 = vadd.f32 0.0, %v549
    %v551 = vpop.f32.mrb[0].mxu0
    %552 = vmatprep.mubr.f32.mxu0 0.0
    %553 = vmatmul.mubr.f32.gmra.mrb[0].mxu0 %v64
    %v554 = vpop.f32.mrb[0].mxu0
    %v555 = vadd.f32 0.0, %v554
    %v556 = vpop.f32.mrb[0].mxu0
    %557 = vmatprep.mubr.f32.mxu0 0.0
    %558 = vmatmul.mubr.f32.gmra.mrb[0].mxu0 %v65
    %v559 = vpop.f32.mrb[0].mxu0
    %v560 = vadd.f32 0.0, %v559
    %v561 = vpop.f32.mrb[0].mxu0
    %562 = vdwg.mxu0
    %563 = vmatprep.subr.mxu0 0.0
    %564 = vmatpush1.msra.mxu0 %v445
    %565 = vmatprep.subr.mxu0 0.0
    %566 = vmatpush1.msra.mxu0 %v446
    %567 = vmatprep.subr.mxu0 0.0
    %568 = vmatpush1.msra.mxu0 %v447
    %569 = vmatprep.subr.mxu0 0.0
    %570 = vmatpush1.msra.mxu0 %v448
    %571 = vmatprep.subr.mxu0 0.0
    %572 = vmatpush1.msra.mxu0 %v449
    %573 = vmatprep.subr.mxu0 0.0
    %574 = vmatpush1.msra.mxu0 %v450
    %575 = vmatprep.subr.mxu0 0.0
    %576 = vmatpush1.msra.mxu0 %v451
    %577 = vmatprep.subr.mxu0 0.0
    %578 = vmatpush1.msra.mxu0 %v452
    %579 = vmatprep.subr.mxu0 0.0
    %580 = vmatpush1.msra.mxu0 %v453
    %581 = vmatprep.subr.mxu0 0.0
    %582 = vmatpush1.msra.mxu0 %v454
    %583 = vmatprep.subr.mxu0 0.0
    %584 = vmatpush1.msra.mxu0 %v455
    %585 = vmatprep.subr.mxu0 0.0
    %586 = vmatpush1.msra.mxu0 %v456
    %587 = vmatprep.subr.mxu0 0.0
    %588 = vmatpush1.msra.mxu0 %v457
    %589 = vmatprep.subr.mxu0 0.0
    %590 = vmatpush1.msra.mxu0 %v458
    %591 = vmatprep.subr.mxu0 0.0
    %592 = vmatpush1.msra.mxu0 %v459
    %593 = vmatprep.subr.mxu0 0.0
    %594 = vmatpush1.msra.mxu0 %v460
    %595 = vmatprep.subr.mxu0 0.0
    %596 = vmatpush1.msra.mxu0 0.0
    %597 = vmatprep.subr.mxu0 0.0
    %598 = vmatpush1.msra.mxu0 0.0
    %599 = vmatprep.subr.mxu0 0.0
    %600 = vmatpush1.msra.mxu0 0.0
    %601 = vmatprep.subr.mxu0 0.0
    %602 = vmatpush1.msra.mxu0 0.0
    %603 = vmatprep.subr.mxu0 0.0
    %604 = vmatpush1.msra.mxu0 0.0
    %605 = vmatprep.subr.mxu0 0.0
    %606 = vmatpush1.msra.mxu0 0.0
    %607 = vmatprep.subr.mxu0 0.0
    %608 = vmatpush1.msra.mxu0 0.0
    %609 = vmatprep.subr.mxu0 0.0
    %610 = vmatpush1.msra.mxu0 0.0
    %611 = vmatprep.subr.mxu0 0.0
    %612 = vmatpush1.msra.mxu0 0.0
    %613 = vmatprep.subr.mxu0 0.0
    %614 = vmatpush1.msra.mxu0 0.0
    %615 = vmatprep.subr.mxu0 0.0
    %616 = vmatpush1.msra.mxu0 0.0
    %617 = vmatprep.subr.mxu0 0.0
    %618 = vmatpush1.msra.mxu0 0.0
    %619 = vmatprep.subr.mxu0 0.0
    %620 = vmatpush1.msra.mxu0 0.0
    %621 = vmatprep.subr.mxu0 0.0
    %622 = vmatpush1.msra.mxu0 0.0
    %623 = vmatprep.subr.mxu0 0.0
    %624 = vmatpush1.msra.mxu0 0.0
    %625 = vmatprep.subr.mxu0 0.0
    %626 = vmatpush1.msra.mxu0 0.0
    %627 = vmatprep.mubr.f32.mxu0 0.0
    %628 = vmatmul.mubr.f32.gmra.mrb[0].mxu0 %v362
    %v629 = vpop.f32.mrb[0].mxu0
    %v630 = vadd.f32 %v545, %v629
    %v631 = vpop.f32.mrb[0].mxu0
    %632 = vmatprep.mubr.f32.mxu0 0.0
    %633 = vmatmul.mubr.f32.gmra.mrb[0].mxu0 %v367
    %v634 = vpop.f32.mrb[0].mxu0
    %v635 = vadd.f32 %v550, %v634
    %v636 = vpop.f32.mrb[0].mxu0
    %637 = vmatprep.mubr.f32.mxu0 0.0
    %638 = vmatmul.mubr.f32.gmra.mrb[0].mxu0 %v437
    %v639 = vpop.f32.mrb[0].mxu0
    %v640 = vadd.f32 %v555, %v639
    %v641 = vpop.f32.mrb[0].mxu0
    %642 = vmatprep.mubr.f32.mxu0 0.0
    %643 = vmatmul.mubr.f32.gmra.mrb[0].mxu0 %v442
    %v644 = vpop.f32.mrb[0].mxu0
    %v645 = vadd.f32 %v560, %v644
    %v646 = vpop.f32.mrb[0].mxu0
    %647 = vdwg.mxu0
    %v648 = vld [vmem:[%s3] sm:$0x1]
    %v650 = vlaneseq
    %v651 = vshrl.u32 %v650, 7
    %v652 = vsub.s32 0, %v651
    %v653 = vrot.slane %v648, %v652
    %v655 = vadd.f32 %v630, %v653
    %v656 = vadd.f32 %v635, %v653
    %v657 = vadd.f32 %v640, %v653
    %v658 = vadd.f32 %v645, %v653
    %v659 = vtanh.pop %v655
    %v660 = vtanh.pop %v656
    %v661 = vtanh.pop %v657
    %v662 = vtanh.pop %v658
    %663 = vst [vmem:[#allocation8] sm:$0xff] %v659
    %664 = vst [vmem:[#allocation8 + $0x8] sm:$0xff] %v660
    %665 = vst [vmem:[#allocation8 + $0x10] sm:$0xff] %v661
    %666 = vst [vmem:[#allocation8 + $0x18] sm:$0xff] %v662
    // Predicated region
    $region30: #{tpu_custom_call.1} parent=1 // pred_check
      _
    $region31: #{tpu_custom_call.1} parent=1 // pred_check_branch
      %668 = sbr.rel (0) target = $region33
    $region32: #{tpu_custom_call.1} parent=1 // pred_region
      %s670 = ssub.s32 512, 512
      %671 = vsyncadd [#allocation4], %s670
      %s672 = sshll.u32 [#allocation8], 4
      %s673 = int_to_ptr.vmem [resolvable:$true] %s672
      %678 = dma.vmem_to_hbm [thread:$0]  %s673, 512, %s4, [#allocation4], 128, 128, 8
    $region33: #{tpu_custom_call.1} parent=1 // pred_fallthru
      _
    // Predicated region
    $region34: #{tpu_custom_call.1} parent=1 // pred_check
      _
    $region35: #{tpu_custom_call.1} parent=1 // pred_check_branch
      %680 = sbr.rel (0) target = $region37
    $region36: #{tpu_custom_call.1} parent=1 // pred_region
      %s682 = ssub.s32 512, 512
      %683 = vsyncadd [#allocation10], %s682
      %s684 = sshll.u32 [#allocation9], 4
      %s685 = int_to_ptr.vmem [resolvable:$true] %s684
      %690 = dma.vmem_to_hbm [thread:$0]  %s685, 512, %s5, [#allocation10], 128, 128, 8
    $region37: #{tpu_custom_call.1} parent=1 // pred_fallthru
      _
    // Predicated region
    $region38: #{tpu_custom_call.1} parent=1 // pred_check
      _
    $region39: #{tpu_custom_call.1} parent=1 // pred_check_branch
      %692 = sbr.rel (0) target = $region41
    $region40: #{tpu_custom_call.1} parent=1 // pred_region
      %693 = dma.done [#allocation4], 512
    $region41: #{tpu_custom_call.1} parent=1 // pred_fallthru
      _
    // Predicated region
    $region42: #{tpu_custom_call.1} parent=1 // pred_check
      _
    $region43: #{tpu_custom_call.1} parent=1 // pred_check_branch
      %695 = sbr.rel (0) target = $region45
    $region44: #{tpu_custom_call.1} parent=1 // pred_region
      %696 = dma.done [#allocation10], 512
    $region45: #{tpu_custom_call.1} parent=1 // pred_fallthru
      _
    %697 = vsyncpa [#allocation3], 1
    %698 = vsyncpa [#allocation6], 1
    %699 = vsyncpa [#allocation4], 1
    %700 = vsyncpa [#allocation10], 1

</llo_original>
